<compile_context>
chip_gen: v7x
topology: tpu7x:2x2x1
jax: 0.10.0
libtpu: 0.0.40
codegen_flags: <defaults>
</compile_context>

<pallas_src>
import math
import jax
import jax.numpy as jnp
from jax.experimental import pallas as pl
from jax.experimental.pallas import tpu as pltpu


# ----------------------------- in-kernel math helpers -----------------------

def _erf(x):
    # Abramowitz & Stegun 7.1.26 rational approximation (|err| < 1.5e-7),
    # built only from ops Mosaic is guaranteed to lower (exp, mul, add, where).
    a1, a2, a3, a4, a5 = 0.254829592, -0.284496736, 1.421413741, -1.453152027, 1.061405429
    p = 0.3275911
    sgn = jnp.where(x >= 0.0, 1.0, -1.0)
    ax = jnp.abs(x)
    t = 1.0 / (1.0 + p * ax)
    poly = ((((a5 * t + a4) * t + a3) * t + a2) * t + a1) * t
    y = 1.0 - poly * jnp.exp(-ax * ax)
    return sgn * y


def _gelu_exact(x):
    # PyTorch F.gelu (default, erf-based), as used by activation='gelu'.
    return 0.5 * x * (1.0 + _erf(x * 0.7071067811865476))


def _layernorm(x, gamma, beta, eps=1e-5):
    mu = jnp.mean(x, axis=-1, keepdims=True)
    var = jnp.mean((x - mu) * (x - mu), axis=-1, keepdims=True)
    return (x - mu) * jax.lax.rsqrt(var + eps) * gamma + beta


# ----------------------------- fused PEM kernel ------------------------------

def _make_pem_kernel(n_layer, d_model, nhead, ffn_dim, norm_first, seq_len):
    D, F, H = d_model, ffn_dim, nhead
    dh = D // H
    S1 = seq_len + 1
    scale = 1.0 / math.sqrt(dh)
    bf16, f32 = jnp.bfloat16, jnp.float32

    def kernel(x_ref, win_ref, wout_ref, w1_ref, w2_ref, vec_ref, o_ref, h_scr):
        x = x_ref[0].astype(f32)                              # (S, D)

        # --- prototype prepend: two direct stores into the (S1, D) scratch ---
        h_scr[0:1, :] = jnp.mean(x, axis=0, keepdims=True)    # prototype token
        h_scr[1:, :] = x
        h = h_scr[...]                                        # (S1, D) f32

        # --- static unroll over encoder layers (all weights resident in VMEM) ---
        for l in range(n_layer):
            win, wout = win_ref[l], wout_ref[l]               # (D,3D), (D,D)  bf16
            w1, w2 = w1_ref[l], w2_ref[l]                     # (D,F),  (F,D)  bf16
            vl = vec_ref[l]                                   # (8, V) f32 vector slab
            in_b = vl[0:1, :3 * D]
            out_b = vl[1:2, :D]
            g1, be1 = vl[2:3, :D], vl[3:4, :D]
            g2, be2 = vl[4:5, :D], vl[5:6, :D]
            b1 = vl[6:7, :F]
            b2 = vl[7:8, :D]

            def sa_block(xin, win=win, wout=wout, in_b=in_b, out_b=out_b):
                # fused QKV projection: (S1, D) @ (D, 3D) + (1, 3D)
                qkv = jnp.dot(xin.astype(bf16), win,
                              preferred_element_type=f32) + in_b        # (S1, 3D) f32
                # head-batched layout (H, S1, dh) from static lane slices
                qh = jnp.stack([qkv[:, 0 * D + i * dh: 0 * D + (i + 1) * dh]
                                for i in range(H)], axis=0).astype(bf16)
                kh = jnp.stack([qkv[:, 1 * D + i * dh: 1 * D + (i + 1) * dh]
                                for i in range(H)], axis=0).astype(bf16)
                vh = jnp.stack([qkv[:, 2 * D + i * dh: 2 * D + (i + 1) * dh]
                                for i in range(H)], axis=0).astype(bf16)
                # scores: one batched matmul over heads -> (H, S1, S1)
                scores = jax.lax.dot_general(
                    qh, kh, (((2,), (2,)), ((0,), (0,))),
                    preferred_element_type=f32) * scale
                scores = scores - jnp.max(scores, axis=-1, keepdims=True)
                p = jnp.exp(scores)
                p = p * pl.reciprocal(jnp.sum(p, axis=-1, keepdims=True),
                                      approx=True)
                # P @ V: one batched matmul over heads -> (H, S1, dh)
                ctx = jax.lax.dot_general(
                    p.astype(bf16), vh, (((2,), (1,)), ((0,), (0,))),
                    preferred_element_type=f32)
                # concat head outputs, single output projection
                attn = jnp.concatenate([ctx[i] for i in range(H)], axis=-1)  # (S1, D)
                return jnp.dot(attn.astype(bf16), wout,
                               preferred_element_type=f32) + out_b

            def ff_block(xin, w1=w1, w2=w2, b1=b1, b2=b2):
                t = jnp.dot(xin.astype(bf16), w1,
                            preferred_element_type=f32) + b1
                t = _gelu_exact(t)
                return jnp.dot(t.astype(bf16), w2,
                               preferred_element_type=f32) + b2

            # TODO(synk): dropout is identity here (eval-mode forward); training-mode
            # stochastic dropout masks are not implemented.
            if norm_first:
                h = h + sa_block(_layernorm(h, g1, be1))
                h = h + ff_block(_layernorm(h, g2, be2))
            else:
                h = _layernorm(h + sa_block(h), g1, be1)
                h = _layernorm(h + ff_block(h), g2, be2)

        o_ref[0] = h.astype(o_ref.dtype)

    return kernel


# ----------------------------- host-side param packing -----------------------

def init_layer_params(key, d_model, ffn_dim):
    """PyTorch-layout parameters for one nn.TransformerEncoderLayer."""
    ks = jax.random.split(key, 6)
    s = 0.02
    f32 = jnp.float32
    return dict(
        in_w=jax.random.normal(ks[0], (3 * d_model, d_model), f32) * s,   # in_proj_weight
        in_b=jax.random.normal(ks[1], (1, 3 * d_model), f32) * s,
        out_w=jax.random.normal(ks[2], (d_model, d_model), f32) * s,      # out_proj.weight
        out_b=jnp.zeros((1, d_model), f32),
        ln1_g=jnp.ones((1, d_model), f32), ln1_b=jnp.zeros((1, d_model), f32),
        ln2_g=jnp.ones((1, d_model), f32), ln2_b=jnp.zeros((1, d_model), f32),
        w1=jax.random.normal(ks[3], (ffn_dim, d_model), f32) * s,         # linear1.weight
        b1=jax.random.normal(ks[4], (1, ffn_dim), f32) * s,
        w2=jax.random.normal(ks[5], (d_model, ffn_dim), f32) * s,         # linear2.weight
        b2=jnp.zeros((1, d_model), f32),
    )


def prepare_params(layer_params, d_model, ffn_dim):
    """One-time host-side prep: transpose + stack + bf16-cast weights, and pack
    all small bias/LN vectors into a single (L, 8, V) f32 slab."""
    D, F = d_model, ffn_dim
    V = max(3 * D, F, D)
    bf16 = jnp.bfloat16

    win = jnp.stack([p["in_w"].T for p in layer_params]).astype(bf16)    # (L, D, 3D)
    wout = jnp.stack([p["out_w"].T for p in layer_params]).astype(bf16)  # (L, D, D)
    w1 = jnp.stack([p["w1"].T for p in layer_params]).astype(bf16)       # (L, D, F)
    w2 = jnp.stack([p["w2"].T for p in layer_params]).astype(bf16)       # (L, F, D)

    def pad(v):
        return jnp.pad(v, ((0, 0), (0, V - v.shape[-1])))

    slabs = []
    for p in layer_params:
        rows = jnp.concatenate([
            pad(p["in_b"]),                       # row 0: in_proj bias   (3D)
            pad(p["out_b"]),                      # row 1: out_proj bias  (D)
            pad(p["ln1_g"]), pad(p["ln1_b"]),     # rows 2,3: LN1 gamma/beta
            pad(p["ln2_g"]), pad(p["ln2_b"]),     # rows 4,5: LN2 gamma/beta
            pad(p["b1"]),                         # row 6: linear1 bias   (F)
            pad(p["b2"]),                         # row 7: linear2 bias   (D)
        ], axis=0)                                # (8, V)
        slabs.append(rows)
    vecs = jnp.stack(slabs)                       # (L, 8, V) f32
    return win, wout, w1, w2, vecs


# ----------------------------- PEM forward wrapper ---------------------------

def pem_forward(x, packed, nhead, norm_first):
    """x: (B, S, D) -> (B, S+1, D) with prototype token prepended, fully fused."""
    win, wout, w1, w2, vecs = packed
    B, S, D = x.shape
    L = win.shape[0]
    F = w1.shape[2]
    S1 = S + 1

    kernel = _make_pem_kernel(L, D, nhead, F, norm_first, S)

    def full_spec(shape):
        nd = len(shape)
        return pl.BlockSpec(shape, lambda b, _nd=nd: (0,) * _nd)

    return pl.pallas_call(
        kernel,
        out_shape=jax.ShapeDtypeStruct((B, S1, D), x.dtype),
        grid=(B,),
        in_specs=[
            pl.BlockSpec((1, S, D), lambda b: (b, 0, 0)),   # x (one batch row)
            full_spec(win.shape),                           # (L, D, 3D)  bf16
            full_spec(wout.shape),                          # (L, D, D)   bf16
            full_spec(w1.shape),                            # (L, D, F)   bf16
            full_spec(w2.shape),                            # (L, F, D)   bf16
            full_spec(vecs.shape),                          # (L, 8, V)   f32
        ],
        out_specs=pl.BlockSpec((1, S1, D), lambda b: (b, 0, 0)),
        scratch_shapes=[pltpu.VMEM((S1, D), jnp.float32)],  # activation buffer
        compiler_params=pltpu.CompilerParams(dimension_semantics=("parallel",)),
    )(x, win, wout, w1, w2, vecs)


if __name__ == "__main__":
    # Module hyperparameters (small, consistent with PEM.__init__):
    x_dim, n_layer, n_head, ffn_dim = 32, 2, 4, 64
    dropout, norm_first = 0.0, False   # dropout is identity in eval forward

    B, S = 2, 8
    key = jax.random.PRNGKey(0)
    kx, kp = jax.random.split(key)
    x = jax.random.normal(kx, (B, S, x_dim), jnp.float32)

    layer_keys = jax.random.split(kp, n_layer)
    layer_params = [init_layer_params(k, x_dim, ffn_dim) for k in layer_keys]
    packed = prepare_params(layer_params, x_dim, ffn_dim)

    y = pem_forward(x, packed, n_head, norm_first)
    y = jax.block_until_ready(y)
    assert y.shape == (B, S + 1, x_dim), y.shape
    assert bool(jnp.all(jnp.isfinite(y)))
    print("KERNEL_OK")
</pallas_src>

<mosaic_0001>
module attributes {stable_mosaic.version = 11 : i64} {
  func.func @kernel(%arg0: i32, %arg1: memref<1x8x32xf32, #tpu.memory_space<vmem>>, %arg2: memref<2x32x96xbf16, #tpu.memory_space<vmem>>, %arg3: memref<2x32x32xbf16, #tpu.memory_space<vmem>>, %arg4: memref<2x32x64xbf16, #tpu.memory_space<vmem>>, %arg5: memref<2x64x32xbf16, #tpu.memory_space<vmem>>, %arg6: memref<2x8x96xf32, #tpu.memory_space<vmem>>, %arg7: memref<1x9x32xf32, #tpu.memory_space<vmem>>, %arg8: memref<9x32xf32, #tpu.memory_space<vmem>>) attributes {dimension_semantics = [#tpu.dimension_semantics<parallel>], iteration_bounds = array<i64: 2>, scalar_prefetch = 0 : i64, scratch_operands = 1 : i64, tpu.core_type = #tpu.core_type<tc>, window_params = [{transform_indices = @transform_0, window_bounds = array<i64: 1, 8, 32>}, {pipeline_mode = #tpu.pipeline_mode<synchronous>, transform_indices = @transform_1, window_bounds = array<i64: 2, 32, 96>}, {pipeline_mode = #tpu.pipeline_mode<synchronous>, transform_indices = @transform_2, window_bounds = array<i64: 2, 32, 32>}, {pipeline_mode = #tpu.pipeline_mode<synchronous>, transform_indices = @transform_3, window_bounds = array<i64: 2, 32, 64>}, {pipeline_mode = #tpu.pipeline_mode<synchronous>, transform_indices = @transform_4, window_bounds = array<i64: 2, 64, 32>}, {pipeline_mode = #tpu.pipeline_mode<synchronous>, transform_indices = @transform_5, window_bounds = array<i64: 2, 8, 96>}, {transform_indices = @transform_6, window_bounds = array<i64: 1, 9, 32>}]} {
    %c0 = arith.constant 0 : index
    %c0_0 = arith.constant 0 : index
    %c0_1 = arith.constant 0 : index
    %0 = vector.load %arg1[%c0, %c0_0, %c0_1] : memref<1x8x32xf32, #tpu.memory_space<vmem>>, vector<1x8x32xf32>
    %1 = vector.shape_cast %0 : vector<1x8x32xf32> to vector<8x32xf32>
    %cst = arith.constant dense<0.000000e+00> : vector<32xf32>
    %2 = vector.multi_reduction <add>, %1, %cst [0] : vector<8x32xf32> to vector<32xf32>
    %3 = vector.shape_cast %2 : vector<32xf32> to vector<1x32xf32>
    %cst_2 = arith.constant 8.000000e+00 : f32
    %4 = vector.broadcast %cst_2 : f32 to vector<1x32xf32>
    %5 = arith.divf %3, %4 : vector<1x32xf32>
    %c0_3 = arith.constant 0 : index
    %c0_4 = arith.constant 0 : index
    %6 = vector.load %arg8[%c0_3, %c0_4] : memref<9x32xf32, #tpu.memory_space<vmem>>, vector<1x32xf32>
    tpu.vector_store %arg8[%c0_3, %c0_4], %5 {strides = array<i32>} : memref<9x32xf32, #tpu.memory_space<vmem>>, vector<1x32xf32>,
    %c1 = arith.constant 1 : index
    %c0_5 = arith.constant 0 : index
    %7 = vector.load %arg8[%c1, %c0_5] : memref<9x32xf32, #tpu.memory_space<vmem>>, vector<8x32xf32>
    tpu.vector_store %arg8[%c1, %c0_5], %1 {strides = array<i32>} : memref<9x32xf32, #tpu.memory_space<vmem>>, vector<8x32xf32>,
    %c0_6 = arith.constant 0 : index
    %c0_7 = arith.constant 0 : index
    %8 = vector.load %arg8[%c0_6, %c0_7] : memref<9x32xf32, #tpu.memory_space<vmem>>, vector<9x32xf32>
    %c0_8 = arith.constant 0 : index
    %c0_9 = arith.constant 0 : index
    %c0_10 = arith.constant 0 : index
    %9 = vector.load %arg2[%c0_8, %c0_9, %c0_10] : memref<2x32x96xbf16, #tpu.memory_space<vmem>>, vector<1x32x96xbf16>
    %10 = vector.shape_cast %9 : vector<1x32x96xbf16> to vector<32x96xbf16>
    %c0_11 = arith.constant 0 : index
    %c0_12 = arith.constant 0 : index
    %c0_13 = arith.constant 0 : index
    %11 = vector.load %arg3[%c0_11, %c0_12, %c0_13] : memref<2x32x32xbf16, #tpu.memory_space<vmem>>, vector<1x32x32xbf16>
    %12 = vector.shape_cast %11 : vector<1x32x32xbf16> to vector<32x32xbf16>
    %c0_14 = arith.constant 0 : index
    %c0_15 = arith.constant 0 : index
    %c0_16 = arith.constant 0 : index
    %13 = vector.load %arg4[%c0_14, %c0_15, %c0_16] : memref<2x32x64xbf16, #tpu.memory_space<vmem>>, vector<1x32x64xbf16>
    %14 = vector.shape_cast %13 : vector<1x32x64xbf16> to vector<32x64xbf16>
    %c0_17 = arith.constant 0 : index
    %c0_18 = arith.constant 0 : index
    %c0_19 = arith.constant 0 : index
    %15 = vector.load %arg5[%c0_17, %c0_18, %c0_19] : memref<2x64x32xbf16, #tpu.memory_space<vmem>>, vector<1x64x32xbf16>
    %16 = vector.shape_cast %15 : vector<1x64x32xbf16> to vector<64x32xbf16>
    %c0_20 = arith.constant 0 : index
    %c0_21 = arith.constant 0 : index
    %c0_22 = arith.constant 0 : index
    %17 = vector.load %arg6[%c0_20, %c0_21, %c0_22] : memref<2x8x96xf32, #tpu.memory_space<vmem>>, vector<1x8x96xf32>
    %18 = vector.shape_cast %17 : vector<1x8x96xf32> to vector<8x96xf32>
    %19 = vector.extract_strided_slice %18 {offsets = [0, 0], sizes = [1, 96], strides = [1, 1]} : vector<8x96xf32> to vector<1x96xf32>
    %20 = vector.extract_strided_slice %18 {offsets = [1, 0], sizes = [1, 32], strides = [1, 1]} : vector<8x96xf32> to vector<1x32xf32>
    %21 = vector.extract_strided_slice %18 {offsets = [2, 0], sizes = [1, 32], strides = [1, 1]} : vector<8x96xf32> to vector<1x32xf32>
    %22 = vector.extract_strided_slice %18 {offsets = [3, 0], sizes = [1, 32], strides = [1, 1]} : vector<8x96xf32> to vector<1x32xf32>
    %23 = vector.extract_strided_slice %18 {offsets = [4, 0], sizes = [1, 32], strides = [1, 1]} : vector<8x96xf32> to vector<1x32xf32>
    %24 = vector.extract_strided_slice %18 {offsets = [5, 0], sizes = [1, 32], strides = [1, 1]} : vector<8x96xf32> to vector<1x32xf32>
    %25 = vector.extract_strided_slice %18 {offsets = [6, 0], sizes = [1, 64], strides = [1, 1]} : vector<8x96xf32> to vector<1x64xf32>
    %26 = vector.extract_strided_slice %18 {offsets = [7, 0], sizes = [1, 32], strides = [1, 1]} : vector<8x96xf32> to vector<1x32xf32>
    %27 = arith.truncf %8 : vector<9x32xf32> to vector<9x32xbf16>
    %cst_23 = arith.constant dense<0.000000e+00> : vector<9x96xf32>
    %28 = tpu.matmul %27, %10, %cst_23 {dimension_numbers = #tpu.dot_dimension_numbers<[1], [0], [0], [1], [0, 0, 1, 1], [], []>} : vector<9x32xbf16>, vector<32x96xbf16>, vector<9x96xf32> -> vector<9x96xf32>
    %29 = vector.broadcast %19 : vector<1x96xf32> to vector<9x96xf32>
    %30 = arith.addf %28, %29 : vector<9x96xf32>
    %31 = vector.extract_strided_slice %30 {offsets = [0, 0], sizes = [9, 8], strides = [1, 1]} : vector<9x96xf32> to vector<9x8xf32>
    %32 = vector.extract_strided_slice %30 {offsets = [0, 8], sizes = [9, 8], strides = [1, 1]} : vector<9x96xf32> to vector<9x8xf32>
    %33 = vector.extract_strided_slice %30 {offsets = [0, 16], sizes = [9, 8], strides = [1, 1]} : vector<9x96xf32> to vector<9x8xf32>
    %34 = vector.extract_strided_slice %30 {offsets = [0, 24], sizes = [9, 8], strides = [1, 1]} : vector<9x96xf32> to vector<9x8xf32>
    %35 = vector.shape_cast %31 : vector<9x8xf32> to vector<1x9x8xf32>
    %36 = vector.shape_cast %32 : vector<9x8xf32> to vector<1x9x8xf32>
    %37 = vector.shape_cast %33 : vector<9x8xf32> to vector<1x9x8xf32>
    %38 = vector.shape_cast %34 : vector<9x8xf32> to vector<1x9x8xf32>
    %39 = tpu.concatenate %35, %36, %37, %38 in 0 : vector<1x9x8xf32>, vector<1x9x8xf32>, vector<1x9x8xf32>, vector<1x9x8xf32> -> vector<4x9x8xf32>
    %40 = arith.truncf %39 : vector<4x9x8xf32> to vector<4x9x8xbf16>
    %41 = vector.extract_strided_slice %30 {offsets = [0, 32], sizes = [9, 8], strides = [1, 1]} : vector<9x96xf32> to vector<9x8xf32>
    %42 = vector.extract_strided_slice %30 {offsets = [0, 40], sizes = [9, 8], strides = [1, 1]} : vector<9x96xf32> to vector<9x8xf32>
    %43 = vector.extract_strided_slice %30 {offsets = [0, 48], sizes = [9, 8], strides = [1, 1]} : vector<9x96xf32> to vector<9x8xf32>
    %44 = vector.extract_strided_slice %30 {offsets = [0, 56], sizes = [9, 8], strides = [1, 1]} : vector<9x96xf32> to vector<9x8xf32>
    %45 = vector.shape_cast %41 : vector<9x8xf32> to vector<1x9x8xf32>
    %46 = vector.shape_cast %42 : vector<9x8xf32> to vector<1x9x8xf32>
    %47 = vector.shape_cast %43 : vector<9x8xf32> to vector<1x9x8xf32>
    %48 = vector.shape_cast %44 : vector<9x8xf32> to vector<1x9x8xf32>
    %49 = tpu.concatenate %45, %46, %47, %48 in 0 : vector<1x9x8xf32>, vector<1x9x8xf32>, vector<1x9x8xf32>, vector<1x9x8xf32> -> vector<4x9x8xf32>
    %50 = arith.truncf %49 : vector<4x9x8xf32> to vector<4x9x8xbf16>
    %51 = vector.extract_strided_slice %30 {offsets = [0, 64], sizes = [9, 8], strides = [1, 1]} : vector<9x96xf32> to vector<9x8xf32>
    %52 = vector.extract_strided_slice %30 {offsets = [0, 72], sizes = [9, 8], strides = [1, 1]} : vector<9x96xf32> to vector<9x8xf32>
    %53 = vector.extract_strided_slice %30 {offsets = [0, 80], sizes = [9, 8], strides = [1, 1]} : vector<9x96xf32> to vector<9x8xf32>
    %54 = vector.extract_strided_slice %30 {offsets = [0, 88], sizes = [9, 8], strides = [1, 1]} : vector<9x96xf32> to vector<9x8xf32>
    %55 = vector.shape_cast %51 : vector<9x8xf32> to vector<1x9x8xf32>
    %56 = vector.shape_cast %52 : vector<9x8xf32> to vector<1x9x8xf32>
    %57 = vector.shape_cast %53 : vector<9x8xf32> to vector<1x9x8xf32>
    %58 = vector.shape_cast %54 : vector<9x8xf32> to vector<1x9x8xf32>
    %59 = tpu.concatenate %55, %56, %57, %58 in 0 : vector<1x9x8xf32>, vector<1x9x8xf32>, vector<1x9x8xf32>, vector<1x9x8xf32> -> vector<4x9x8xf32>
    %60 = arith.truncf %59 : vector<4x9x8xf32> to vector<4x9x8xbf16>
    %cst_24 = arith.constant dense<0.000000e+00> : vector<4x9x9xf32>
    %61 = tpu.matmul %40, %50, %cst_24 {dimension_numbers = #tpu.dot_dimension_numbers<[2], [2], [1], [1], [0, 0, 0, 1, 1, 1], [0], [0]>} : vector<4x9x8xbf16>, vector<4x9x8xbf16>, vector<4x9x9xf32> -> vector<4x9x9xf32>
    %cst_25 = arith.constant 0.353553385 : f32
    %62 = vector.broadcast %cst_25 : f32 to vector<4x9x9xf32>
    %63 = arith.mulf %61, %62 : vector<4x9x9xf32>
    %cst_26 = arith.constant dense<0xFF800000> : vector<4x9xf32>
    %64 = vector.multi_reduction <maximumf>, %63, %cst_26 [2] : vector<4x9x9xf32> to vector<4x9xf32>
    %65 = vector.shape_cast %64 : vector<4x9xf32> to vector<4x9x1xf32>
    %66 = vector.broadcast %65 : vector<4x9x1xf32> to vector<4x9x9xf32>
    %67 = arith.subf %63, %66 : vector<4x9x9xf32>
    %68 = math.exp %67 : vector<4x9x9xf32>
    %cst_27 = arith.constant dense<0.000000e+00> : vector<4x9xf32>
    %69 = vector.multi_reduction <add>, %68, %cst_27 [2] : vector<4x9x9xf32> to vector<4x9xf32>
    %70 = vector.shape_cast %69 : vector<4x9xf32> to vector<4x9x1xf32>
    %71 = tpu.reciprocal %70 {approx = true} : vector<4x9x1xf32> -> vector<4x9x1xf32>
    %72 = vector.broadcast %71 : vector<4x9x1xf32> to vector<4x9x9xf32>
    %73 = arith.mulf %68, %72 : vector<4x9x9xf32>
    %74 = arith.truncf %73 : vector<4x9x9xf32> to vector<4x9x9xbf16>
    %cst_28 = arith.constant dense<0.000000e+00> : vector<4x9x8xf32>
    %75 = tpu.matmul %74, %60, %cst_28 {dimension_numbers = #tpu.dot_dimension_numbers<[2], [1], [1], [2], [0, 0, 0, 1, 1, 2], [0], [0]>} : vector<4x9x9xbf16>, vector<4x9x8xbf16>, vector<4x9x8xf32> -> vector<4x9x8xf32>
    %76 = vector.extract_strided_slice %75 {offsets = [0, 0, 0], sizes = [1, 9, 8], strides = [1, 1, 1]} : vector<4x9x8xf32> to vector<1x9x8xf32>
    %77 = vector.shape_cast %76 : vector<1x9x8xf32> to vector<9x8xf32>
    %78 = vector.extract_strided_slice %75 {offsets = [1, 0, 0], sizes = [1, 9, 8], strides = [1, 1, 1]} : vector<4x9x8xf32> to vector<1x9x8xf32>
    %79 = vector.shape_cast %78 : vector<1x9x8xf32> to vector<9x8xf32>
    %80 = vector.extract_strided_slice %75 {offsets = [2, 0, 0], sizes = [1, 9, 8], strides = [1, 1, 1]} : vector<4x9x8xf32> to vector<1x9x8xf32>
    %81 = vector.shape_cast %80 : vector<1x9x8xf32> to vector<9x8xf32>
    %82 = vector.extract_strided_slice %75 {offsets = [3, 0, 0], sizes = [1, 9, 8], strides = [1, 1, 1]} : vector<4x9x8xf32> to vector<1x9x8xf32>
    %83 = vector.shape_cast %82 : vector<1x9x8xf32> to vector<9x8xf32>
    %84 = tpu.concatenate %77, %79, %81, %83 in 1 : vector<9x8xf32>, vector<9x8xf32>, vector<9x8xf32>, vector<9x8xf32> -> vector<9x32xf32>
    %85 = arith.truncf %84 : vector<9x32xf32> to vector<9x32xbf16>
    %cst_29 = arith.constant dense<0.000000e+00> : vector<9x32xf32>
    %86 = tpu.matmul %85, %12, %cst_29 {dimension_numbers = #tpu.dot_dimension_numbers<[1], [0], [0], [1], [0, 0, 1, 1], [], []>} : vector<9x32xbf16>, vector<32x32xbf16>, vector<9x32xf32> -> vector<9x32xf32>
    %87 = vector.broadcast %20 : vector<1x32xf32> to vector<9x32xf32>
    %88 = arith.addf %86, %87 : vector<9x32xf32>
    %89 = arith.addf %8, %88 : vector<9x32xf32>
    %cst_30 = arith.constant dense<0.000000e+00> : vector<9xf32>
    %90 = vector.multi_reduction <add>, %89, %cst_30 [1] : vector<9x32xf32> to vector<9xf32>
    %91 = vector.shape_cast %90 : vector<9xf32> to vector<9x1xf32>
    %cst_31 = arith.constant 3.200000e+01 : f32
    %92 = vector.broadcast %cst_31 : f32 to vector<9x1xf32>
    %93 = arith.divf %91, %92 : vector<9x1xf32>
    %94 = vector.broadcast %93 : vector<9x1xf32> to vector<9x32xf32>
    %95 = arith.subf %89, %94 : vector<9x32xf32>
    %96 = vector.broadcast %93 : vector<9x1xf32> to vector<9x32xf32>
    %97 = arith.subf %89, %96 : vector<9x32xf32>
    %98 = arith.mulf %95, %97 : vector<9x32xf32>
    %cst_32 = arith.constant dense<0.000000e+00> : vector<9xf32>
    %99 = vector.multi_reduction <add>, %98, %cst_32 [1] : vector<9x32xf32> to vector<9xf32>
    %100 = vector.shape_cast %99 : vector<9xf32> to vector<9x1xf32>
    %cst_33 = arith.constant 3.200000e+01 : f32
    %101 = vector.broadcast %cst_33 : f32 to vector<9x1xf32>
    %102 = arith.divf %100, %101 : vector<9x1xf32>
    %103 = vector.broadcast %93 : vector<9x1xf32> to vector<9x32xf32>
    %104 = arith.subf %89, %103 : vector<9x32xf32>
    %cst_34 = arith.constant 9.99999974E-6 : f32
    %105 = vector.broadcast %cst_34 : f32 to vector<9x1xf32>
    %106 = arith.addf %102, %105 : vector<9x1xf32>
    %107 = math.rsqrt %106 : vector<9x1xf32>
    %108 = vector.broadcast %107 : vector<9x1xf32> to vector<9x32xf32>
    %109 = arith.mulf %104, %108 : vector<9x32xf32>
    %110 = vector.broadcast %21 : vector<1x32xf32> to vector<9x32xf32>
    %111 = arith.mulf %109, %110 : vector<9x32xf32>
    %112 = vector.broadcast %22 : vector<1x32xf32> to vector<9x32xf32>
    %113 = arith.addf %111, %112 : vector<9x32xf32>
    %114 = arith.truncf %113 : vector<9x32xf32> to vector<9x32xbf16>
    %cst_35 = arith.constant dense<0.000000e+00> : vector<9x64xf32>
    %115 = tpu.matmul %114, %14, %cst_35 {dimension_numbers = #tpu.dot_dimension_numbers<[1], [0], [0], [1], [0, 0, 1, 1], [], []>} : vector<9x32xbf16>, vector<32x64xbf16>, vector<9x64xf32> -> vector<9x64xf32>
    %116 = vector.broadcast %25 : vector<1x64xf32> to vector<9x64xf32>
    %117 = arith.addf %115, %116 : vector<9x64xf32>
    %cst_36 = arith.constant 5.000000e-01 : f32
    %118 = vector.broadcast %cst_36 : f32 to vector<9x64xf32>
    %119 = arith.mulf %118, %117 : vector<9x64xf32>
    %cst_37 = arith.constant 0.707106769 : f32
    %120 = vector.broadcast %cst_37 : f32 to vector<9x64xf32>
    %121 = arith.mulf %117, %120 : vector<9x64xf32>
    %cst_38 = arith.constant 0.000000e+00 : f32
    %122 = vector.broadcast %cst_38 : f32 to vector<9x64xf32>
    %123 = arith.cmpf oge, %121, %122 : vector<9x64xf32>
    %cst_39 = arith.constant 1.000000e+00 : f32
    %cst_40 = arith.constant -1.000000e+00 : f32
    %124 = vector.broadcast %cst_39 : f32 to vector<9x64xf32>
    %125 = vector.broadcast %cst_40 : f32 to vector<9x64xf32>
    %126 = arith.select %123, %124, %125 : vector<9x64xi1>, vector<9x64xf32>
    %127 = math.absf %121 : vector<9x64xf32>
    %cst_41 = arith.constant 0.327591091 : f32
    %128 = vector.broadcast %cst_41 : f32 to vector<9x64xf32>
    %129 = arith.mulf %128, %127 : vector<9x64xf32>
    %cst_42 = arith.constant 1.000000e+00 : f32
    %130 = vector.broadcast %cst_42 : f32 to vector<9x64xf32>
    %131 = arith.addf %130, %129 : vector<9x64xf32>
    %cst_43 = arith.constant 1.000000e+00 : f32
    %132 = vector.broadcast %cst_43 : f32 to vector<9x64xf32>
    %133 = arith.divf %132, %131 : vector<9x64xf32>
    %cst_44 = arith.constant 1.06140542 : f32
    %134 = vector.broadcast %cst_44 : f32 to vector<9x64xf32>
    %135 = arith.mulf %134, %133 : vector<9x64xf32>
    %cst_45 = arith.constant -1.45315206 : f32
    %136 = vector.broadcast %cst_45 : f32 to vector<9x64xf32>
    %137 = arith.addf %135, %136 : vector<9x64xf32>
    %138 = arith.mulf %137, %133 : vector<9x64xf32>
    %cst_46 = arith.constant 1.42141378 : f32
    %139 = vector.broadcast %cst_46 : f32 to vector<9x64xf32>
    %140 = arith.addf %138, %139 : vector<9x64xf32>
    %141 = arith.mulf %140, %133 : vector<9x64xf32>
    %cst_47 = arith.constant -0.284496725 : f32
    %142 = vector.broadcast %cst_47 : f32 to vector<9x64xf32>
    %143 = arith.addf %141, %142 : vector<9x64xf32>
    %144 = arith.mulf %143, %133 : vector<9x64xf32>
    %cst_48 = arith.constant 0.254829586 : f32
    %145 = vector.broadcast %cst_48 : f32 to vector<9x64xf32>
    %146 = arith.addf %144, %145 : vector<9x64xf32>
    %147 = arith.mulf %146, %133 : vector<9x64xf32>
    %cst_49 = arith.constant 0.000000e+00 : f32
    %148 = vector.broadcast %cst_49 : f32 to vector<9x64xf32>
    %149 = arith.subf %148, %127 : vector<9x64xf32>
    %150 = arith.mulf %149, %127 : vector<9x64xf32>
    %151 = math.exp %150 : vector<9x64xf32>
    %152 = arith.mulf %147, %151 : vector<9x64xf32>
    %cst_50 = arith.constant 1.000000e+00 : f32
    %153 = vector.broadcast %cst_50 : f32 to vector<9x64xf32>
    %154 = arith.subf %153, %152 : vector<9x64xf32>
    %155 = arith.mulf %126, %154 : vector<9x64xf32>
    %cst_51 = arith.constant 1.000000e+00 : f32
    %156 = vector.broadcast %cst_51 : f32 to vector<9x64xf32>
    %157 = arith.addf %156, %155 : vector<9x64xf32>
    %158 = arith.mulf %119, %157 : vector<9x64xf32>
    %159 = arith.truncf %158 : vector<9x64xf32> to vector<9x64xbf16>
    %cst_52 = arith.constant dense<0.000000e+00> : vector<9x32xf32>
    %160 = tpu.matmul %159, %16, %cst_52 {dimension_numbers = #tpu.dot_dimension_numbers<[1], [0], [0], [1], [0, 0, 1, 1], [], []>} : vector<9x64xbf16>, vector<64x32xbf16>, vector<9x32xf32> -> vector<9x32xf32>
    %161 = vector.broadcast %26 : vector<1x32xf32> to vector<9x32xf32>
    %162 = arith.addf %160, %161 : vector<9x32xf32>
    %163 = arith.addf %113, %162 : vector<9x32xf32>
    %cst_53 = arith.constant dense<0.000000e+00> : vector<9xf32>
    %164 = vector.multi_reduction <add>, %163, %cst_53 [1] : vector<9x32xf32> to vector<9xf32>
    %165 = vector.shape_cast %164 : vector<9xf32> to vector<9x1xf32>
    %cst_54 = arith.constant 3.200000e+01 : f32
    %166 = vector.broadcast %cst_54 : f32 to vector<9x1xf32>
    %167 = arith.divf %165, %166 : vector<9x1xf32>
    %168 = vector.broadcast %167 : vector<9x1xf32> to vector<9x32xf32>
    %169 = arith.subf %163, %168 : vector<9x32xf32>
    %170 = vector.broadcast %167 : vector<9x1xf32> to vector<9x32xf32>
    %171 = arith.subf %163, %170 : vector<9x32xf32>
    %172 = arith.mulf %169, %171 : vector<9x32xf32>
    %cst_55 = arith.constant dense<0.000000e+00> : vector<9xf32>
    %173 = vector.multi_reduction <add>, %172, %cst_55 [1] : vector<9x32xf32> to vector<9xf32>
    %174 = vector.shape_cast %173 : vector<9xf32> to vector<9x1xf32>
    %cst_56 = arith.constant 3.200000e+01 : f32
    %175 = vector.broadcast %cst_56 : f32 to vector<9x1xf32>
    %176 = arith.divf %174, %175 : vector<9x1xf32>
    %177 = vector.broadcast %167 : vector<9x1xf32> to vector<9x32xf32>
    %178 = arith.subf %163, %177 : vector<9x32xf32>
    %cst_57 = arith.constant 9.99999974E-6 : f32
    %179 = vector.broadcast %cst_57 : f32 to vector<9x1xf32>
    %180 = arith.addf %176, %179 : vector<9x1xf32>
    %181 = math.rsqrt %180 : vector<9x1xf32>
    %182 = vector.broadcast %181 : vector<9x1xf32> to vector<9x32xf32>
    %183 = arith.mulf %178, %182 : vector<9x32xf32>
    %184 = vector.broadcast %23 : vector<1x32xf32> to vector<9x32xf32>
    %185 = arith.mulf %183, %184 : vector<9x32xf32>
    %186 = vector.broadcast %24 : vector<1x32xf32> to vector<9x32xf32>
    %187 = arith.addf %185, %186 : vector<9x32xf32>
    %c1_58 = arith.constant 1 : index
    %c0_59 = arith.constant 0 : index
    %c0_60 = arith.constant 0 : index
    %188 = vector.load %arg2[%c1_58, %c0_59, %c0_60] : memref<2x32x96xbf16, #tpu.memory_space<vmem>>, vector<1x32x96xbf16>
    %189 = vector.shape_cast %188 : vector<1x32x96xbf16> to vector<32x96xbf16>
    %c1_61 = arith.constant 1 : index
    %c0_62 = arith.constant 0 : index
    %c0_63 = arith.constant 0 : index
    %190 = vector.load %arg3[%c1_61, %c0_62, %c0_63] : memref<2x32x32xbf16, #tpu.memory_space<vmem>>, vector<1x32x32xbf16>
    %191 = vector.shape_cast %190 : vector<1x32x32xbf16> to vector<32x32xbf16>
    %c1_64 = arith.constant 1 : index
    %c0_65 = arith.constant 0 : index
    %c0_66 = arith.constant 0 : index
    %192 = vector.load %arg4[%c1_64, %c0_65, %c0_66] : memref<2x32x64xbf16, #tpu.memory_space<vmem>>, vector<1x32x64xbf16>
    %193 = vector.shape_cast %192 : vector<1x32x64xbf16> to vector<32x64xbf16>
    %c1_67 = arith.constant 1 : index
    %c0_68 = arith.constant 0 : index
    %c0_69 = arith.constant 0 : index
    %194 = vector.load %arg5[%c1_67, %c0_68, %c0_69] : memref<2x64x32xbf16, #tpu.memory_space<vmem>>, vector<1x64x32xbf16>
    %195 = vector.shape_cast %194 : vector<1x64x32xbf16> to vector<64x32xbf16>
    %c1_70 = arith.constant 1 : index
    %c0_71 = arith.constant 0 : index
    %c0_72 = arith.constant 0 : index
    %196 = vector.load %arg6[%c1_70, %c0_71, %c0_72] : memref<2x8x96xf32, #tpu.memory_space<vmem>>, vector<1x8x96xf32>
    %197 = vector.shape_cast %196 : vector<1x8x96xf32> to vector<8x96xf32>
    %198 = vector.extract_strided_slice %197 {offsets = [0, 0], sizes = [1, 96], strides = [1, 1]} : vector<8x96xf32> to vector<1x96xf32>
    %199 = vector.extract_strided_slice %197 {offsets = [1, 0], sizes = [1, 32], strides = [1, 1]} : vector<8x96xf32> to vector<1x32xf32>
    %200 = vector.extract_strided_slice %197 {offsets = [2, 0], sizes = [1, 32], strides = [1, 1]} : vector<8x96xf32> to vector<1x32xf32>
    %201 = vector.extract_strided_slice %197 {offsets = [3, 0], sizes = [1, 32], strides = [1, 1]} : vector<8x96xf32> to vector<1x32xf32>
    %202 = vector.extract_strided_slice %197 {offsets = [4, 0], sizes = [1, 32], strides = [1, 1]} : vector<8x96xf32> to vector<1x32xf32>
    %203 = vector.extract_strided_slice %197 {offsets = [5, 0], sizes = [1, 32], strides = [1, 1]} : vector<8x96xf32> to vector<1x32xf32>
    %204 = vector.extract_strided_slice %197 {offsets = [6, 0], sizes = [1, 64], strides = [1, 1]} : vector<8x96xf32> to vector<1x64xf32>
    %205 = vector.extract_strided_slice %197 {offsets = [7, 0], sizes = [1, 32], strides = [1, 1]} : vector<8x96xf32> to vector<1x32xf32>
    %206 = arith.truncf %187 : vector<9x32xf32> to vector<9x32xbf16>
    %cst_73 = arith.constant dense<0.000000e+00> : vector<9x96xf32>
    %207 = tpu.matmul %206, %189, %cst_73 {dimension_numbers = #tpu.dot_dimension_numbers<[1], [0], [0], [1], [0, 0, 1, 1], [], []>} : vector<9x32xbf16>, vector<32x96xbf16>, vector<9x96xf32> -> vector<9x96xf32>
    %208 = vector.broadcast %198 : vector<1x96xf32> to vector<9x96xf32>
    %209 = arith.addf %207, %208 : vector<9x96xf32>
    %210 = vector.extract_strided_slice %209 {offsets = [0, 0], sizes = [9, 8], strides = [1, 1]} : vector<9x96xf32> to vector<9x8xf32>
    %211 = vector.extract_strided_slice %209 {offsets = [0, 8], sizes = [9, 8], strides = [1, 1]} : vector<9x96xf32> to vector<9x8xf32>
    %212 = vector.extract_strided_slice %209 {offsets = [0, 16], sizes = [9, 8], strides = [1, 1]} : vector<9x96xf32> to vector<9x8xf32>
    %213 = vector.extract_strided_slice %209 {offsets = [0, 24], sizes = [9, 8], strides = [1, 1]} : vector<9x96xf32> to vector<9x8xf32>
    %214 = vector.shape_cast %210 : vector<9x8xf32> to vector<1x9x8xf32>
    %215 = vector.shape_cast %211 : vector<9x8xf32> to vector<1x9x8xf32>
    %216 = vector.shape_cast %212 : vector<9x8xf32> to vector<1x9x8xf32>
    %217 = vector.shape_cast %213 : vector<9x8xf32> to vector<1x9x8xf32>
    %218 = tpu.concatenate %214, %215, %216, %217 in 0 : vector<1x9x8xf32>, vector<1x9x8xf32>, vector<1x9x8xf32>, vector<1x9x8xf32> -> vector<4x9x8xf32>
    %219 = arith.truncf %218 : vector<4x9x8xf32> to vector<4x9x8xbf16>
    %220 = vector.extract_strided_slice %209 {offsets = [0, 32], sizes = [9, 8], strides = [1, 1]} : vector<9x96xf32> to vector<9x8xf32>
    %221 = vector.extract_strided_slice %209 {offsets = [0, 40], sizes = [9, 8], strides = [1, 1]} : vector<9x96xf32> to vector<9x8xf32>
    %222 = vector.extract_strided_slice %209 {offsets = [0, 48], sizes = [9, 8], strides = [1, 1]} : vector<9x96xf32> to vector<9x8xf32>
    %223 = vector.extract_strided_slice %209 {offsets = [0, 56], sizes = [9, 8], strides = [1, 1]} : vector<9x96xf32> to vector<9x8xf32>
    %224 = vector.shape_cast %220 : vector<9x8xf32> to vector<1x9x8xf32>
    %225 = vector.shape_cast %221 : vector<9x8xf32> to vector<1x9x8xf32>
    %226 = vector.shape_cast %222 : vector<9x8xf32> to vector<1x9x8xf32>
    %227 = vector.shape_cast %223 : vector<9x8xf32> to vector<1x9x8xf32>
    %228 = tpu.concatenate %224, %225, %226, %227 in 0 : vector<1x9x8xf32>, vector<1x9x8xf32>, vector<1x9x8xf32>, vector<1x9x8xf32> -> vector<4x9x8xf32>
    %229 = arith.truncf %228 : vector<4x9x8xf32> to vector<4x9x8xbf16>
    %230 = vector.extract_strided_slice %209 {offsets = [0, 64], sizes = [9, 8], strides = [1, 1]} : vector<9x96xf32> to vector<9x8xf32>
    %231 = vector.extract_strided_slice %209 {offsets = [0, 72], sizes = [9, 8], strides = [1, 1]} : vector<9x96xf32> to vector<9x8xf32>
    %232 = vector.extract_strided_slice %209 {offsets = [0, 80], sizes = [9, 8], strides = [1, 1]} : vector<9x96xf32> to vector<9x8xf32>
    %233 = vector.extract_strided_slice %209 {offsets = [0, 88], sizes = [9, 8], strides = [1, 1]} : vector<9x96xf32> to vector<9x8xf32>
    %234 = vector.shape_cast %230 : vector<9x8xf32> to vector<1x9x8xf32>
    %235 = vector.shape_cast %231 : vector<9x8xf32> to vector<1x9x8xf32>
    %236 = vector.shape_cast %232 : vector<9x8xf32> to vector<1x9x8xf32>
    %237 = vector.shape_cast %233 : vector<9x8xf32> to vector<1x9x8xf32>
    %238 = tpu.concatenate %234, %235, %236, %237 in 0 : vector<1x9x8xf32>, vector<1x9x8xf32>, vector<1x9x8xf32>, vector<1x9x8xf32> -> vector<4x9x8xf32>
    %239 = arith.truncf %238 : vector<4x9x8xf32> to vector<4x9x8xbf16>
    %cst_74 = arith.constant dense<0.000000e+00> : vector<4x9x9xf32>
    %240 = tpu.matmul %219, %229, %cst_74 {dimension_numbers = #tpu.dot_dimension_numbers<[2], [2], [1], [1], [0, 0, 0, 1, 1, 1], [0], [0]>} : vector<4x9x8xbf16>, vector<4x9x8xbf16>, vector<4x9x9xf32> -> vector<4x9x9xf32>
    %cst_75 = arith.constant 0.353553385 : f32
    %241 = vector.broadcast %cst_75 : f32 to vector<4x9x9xf32>
    %242 = arith.mulf %240, %241 : vector<4x9x9xf32>
    %cst_76 = arith.constant dense<0xFF800000> : vector<4x9xf32>
    %243 = vector.multi_reduction <maximumf>, %242, %cst_76 [2] : vector<4x9x9xf32> to vector<4x9xf32>
    %244 = vector.shape_cast %243 : vector<4x9xf32> to vector<4x9x1xf32>
    %245 = vector.broadcast %244 : vector<4x9x1xf32> to vector<4x9x9xf32>
    %246 = arith.subf %242, %245 : vector<4x9x9xf32>
    %247 = math.exp %246 : vector<4x9x9xf32>
    %cst_77 = arith.constant dense<0.000000e+00> : vector<4x9xf32>
    %248 = vector.multi_reduction <add>, %247, %cst_77 [2] : vector<4x9x9xf32> to vector<4x9xf32>
    %249 = vector.shape_cast %248 : vector<4x9xf32> to vector<4x9x1xf32>
    %250 = tpu.reciprocal %249 {approx = true} : vector<4x9x1xf32> -> vector<4x9x1xf32>
    %251 = vector.broadcast %250 : vector<4x9x1xf32> to vector<4x9x9xf32>
    %252 = arith.mulf %247, %251 : vector<4x9x9xf32>
    %253 = arith.truncf %252 : vector<4x9x9xf32> to vector<4x9x9xbf16>
    %cst_78 = arith.constant dense<0.000000e+00> : vector<4x9x8xf32>
    %254 = tpu.matmul %253, %239, %cst_78 {dimension_numbers = #tpu.dot_dimension_numbers<[2], [1], [1], [2], [0, 0, 0, 1, 1, 2], [0], [0]>} : vector<4x9x9xbf16>, vector<4x9x8xbf16>, vector<4x9x8xf32> -> vector<4x9x8xf32>
    %255 = vector.extract_strided_slice %254 {offsets = [0, 0, 0], sizes = [1, 9, 8], strides = [1, 1, 1]} : vector<4x9x8xf32> to vector<1x9x8xf32>
    %256 = vector.shape_cast %255 : vector<1x9x8xf32> to vector<9x8xf32>
    %257 = vector.extract_strided_slice %254 {offsets = [1, 0, 0], sizes = [1, 9, 8], strides = [1, 1, 1]} : vector<4x9x8xf32> to vector<1x9x8xf32>
    %258 = vector.shape_cast %257 : vector<1x9x8xf32> to vector<9x8xf32>
    %259 = vector.extract_strided_slice %254 {offsets = [2, 0, 0], sizes = [1, 9, 8], strides = [1, 1, 1]} : vector<4x9x8xf32> to vector<1x9x8xf32>
    %260 = vector.shape_cast %259 : vector<1x9x8xf32> to vector<9x8xf32>
    %261 = vector.extract_strided_slice %254 {offsets = [3, 0, 0], sizes = [1, 9, 8], strides = [1, 1, 1]} : vector<4x9x8xf32> to vector<1x9x8xf32>
    %262 = vector.shape_cast %261 : vector<1x9x8xf32> to vector<9x8xf32>
    %263 = tpu.concatenate %256, %258, %260, %262 in 1 : vector<9x8xf32>, vector<9x8xf32>, vector<9x8xf32>, vector<9x8xf32> -> vector<9x32xf32>
    %264 = arith.truncf %263 : vector<9x32xf32> to vector<9x32xbf16>
    %cst_79 = arith.constant dense<0.000000e+00> : vector<9x32xf32>
    %265 = tpu.matmul %264, %191, %cst_79 {dimension_numbers = #tpu.dot_dimension_numbers<[1], [0], [0], [1], [0, 0, 1, 1], [], []>} : vector<9x32xbf16>, vector<32x32xbf16>, vector<9x32xf32> -> vector<9x32xf32>
    %266 = vector.broadcast %199 : vector<1x32xf32> to vector<9x32xf32>
    %267 = arith.addf %265, %266 : vector<9x32xf32>
    %268 = arith.addf %187, %267 : vector<9x32xf32>
    %cst_80 = arith.constant dense<0.000000e+00> : vector<9xf32>
    %269 = vector.multi_reduction <add>, %268, %cst_80 [1] : vector<9x32xf32> to vector<9xf32>
    %270 = vector.shape_cast %269 : vector<9xf32> to vector<9x1xf32>
    %cst_81 = arith.constant 3.200000e+01 : f32
    %271 = vector.broadcast %cst_81 : f32 to vector<9x1xf32>
    %272 = arith.divf %270, %271 : vector<9x1xf32>
    %273 = vector.broadcast %272 : vector<9x1xf32> to vector<9x32xf32>
    %274 = arith.subf %268, %273 : vector<9x32xf32>
    %275 = vector.broadcast %272 : vector<9x1xf32> to vector<9x32xf32>
    %276 = arith.subf %268, %275 : vector<9x32xf32>
    %277 = arith.mulf %274, %276 : vector<9x32xf32>
    %cst_82 = arith.constant dense<0.000000e+00> : vector<9xf32>
    %278 = vector.multi_reduction <add>, %277, %cst_82 [1] : vector<9x32xf32> to vector<9xf32>
    %279 = vector.shape_cast %278 : vector<9xf32> to vector<9x1xf32>
    %cst_83 = arith.constant 3.200000e+01 : f32
    %280 = vector.broadcast %cst_83 : f32 to vector<9x1xf32>
    %281 = arith.divf %279, %280 : vector<9x1xf32>
    %282 = vector.broadcast %272 : vector<9x1xf32> to vector<9x32xf32>
    %283 = arith.subf %268, %282 : vector<9x32xf32>
    %cst_84 = arith.constant 9.99999974E-6 : f32
    %284 = vector.broadcast %cst_84 : f32 to vector<9x1xf32>
    %285 = arith.addf %281, %284 : vector<9x1xf32>
    %286 = math.rsqrt %285 : vector<9x1xf32>
    %287 = vector.broadcast %286 : vector<9x1xf32> to vector<9x32xf32>
    %288 = arith.mulf %283, %287 : vector<9x32xf32>
    %289 = vector.broadcast %200 : vector<1x32xf32> to vector<9x32xf32>
    %290 = arith.mulf %288, %289 : vector<9x32xf32>
    %291 = vector.broadcast %201 : vector<1x32xf32> to vector<9x32xf32>
    %292 = arith.addf %290, %291 : vector<9x32xf32>
    %293 = arith.truncf %292 : vector<9x32xf32> to vector<9x32xbf16>
    %cst_85 = arith.constant dense<0.000000e+00> : vector<9x64xf32>
    %294 = tpu.matmul %293, %193, %cst_85 {dimension_numbers = #tpu.dot_dimension_numbers<[1], [0], [0], [1], [0, 0, 1, 1], [], []>} : vector<9x32xbf16>, vector<32x64xbf16>, vector<9x64xf32> -> vector<9x64xf32>
    %295 = vector.broadcast %204 : vector<1x64xf32> to vector<9x64xf32>
    %296 = arith.addf %294, %295 : vector<9x64xf32>
    %cst_86 = arith.constant 5.000000e-01 : f32
    %297 = vector.broadcast %cst_86 : f32 to vector<9x64xf32>
    %298 = arith.mulf %297, %296 : vector<9x64xf32>
    %cst_87 = arith.constant 0.707106769 : f32
    %299 = vector.broadcast %cst_87 : f32 to vector<9x64xf32>
    %300 = arith.mulf %296, %299 : vector<9x64xf32>
    %cst_88 = arith.constant 0.000000e+00 : f32
    %301 = vector.broadcast %cst_88 : f32 to vector<9x64xf32>
    %302 = arith.cmpf oge, %300, %301 : vector<9x64xf32>
    %cst_89 = arith.constant 1.000000e+00 : f32
    %cst_90 = arith.constant -1.000000e+00 : f32
    %303 = vector.broadcast %cst_89 : f32 to vector<9x64xf32>
    %304 = vector.broadcast %cst_90 : f32 to vector<9x64xf32>
    %305 = arith.select %302, %303, %304 : vector<9x64xi1>, vector<9x64xf32>
    %306 = math.absf %300 : vector<9x64xf32>
    %cst_91 = arith.constant 0.327591091 : f32
    %307 = vector.broadcast %cst_91 : f32 to vector<9x64xf32>
    %308 = arith.mulf %307, %306 : vector<9x64xf32>
    %cst_92 = arith.constant 1.000000e+00 : f32
    %309 = vector.broadcast %cst_92 : f32 to vector<9x64xf32>
    %310 = arith.addf %309, %308 : vector<9x64xf32>
    %cst_93 = arith.constant 1.000000e+00 : f32
    %311 = vector.broadcast %cst_93 : f32 to vector<9x64xf32>
    %312 = arith.divf %311, %310 : vector<9x64xf32>
    %cst_94 = arith.constant 1.06140542 : f32
    %313 = vector.broadcast %cst_94 : f32 to vector<9x64xf32>
    %314 = arith.mulf %313, %312 : vector<9x64xf32>
    %cst_95 = arith.constant -1.45315206 : f32
    %315 = vector.broadcast %cst_95 : f32 to vector<9x64xf32>
    %316 = arith.addf %314, %315 : vector<9x64xf32>
    %317 = arith.mulf %316, %312 : vector<9x64xf32>
    %cst_96 = arith.constant 1.42141378 : f32
    %318 = vector.broadcast %cst_96 : f32 to vector<9x64xf32>
    %319 = arith.addf %317, %318 : vector<9x64xf32>
    %320 = arith.mulf %319, %312 : vector<9x64xf32>
    %cst_97 = arith.constant -0.284496725 : f32
    %321 = vector.broadcast %cst_97 : f32 to vector<9x64xf32>
    %322 = arith.addf %320, %321 : vector<9x64xf32>
    %323 = arith.mulf %322, %312 : vector<9x64xf32>
    %cst_98 = arith.constant 0.254829586 : f32
    %324 = vector.broadcast %cst_98 : f32 to vector<9x64xf32>
    %325 = arith.addf %323, %324 : vector<9x64xf32>
    %326 = arith.mulf %325, %312 : vector<9x64xf32>
    %cst_99 = arith.constant 0.000000e+00 : f32
    %327 = vector.broadcast %cst_99 : f32 to vector<9x64xf32>
    %328 = arith.subf %327, %306 : vector<9x64xf32>
    %329 = arith.mulf %328, %306 : vector<9x64xf32>
    %330 = math.exp %329 : vector<9x64xf32>
    %331 = arith.mulf %326, %330 : vector<9x64xf32>
    %cst_100 = arith.constant 1.000000e+00 : f32
    %332 = vector.broadcast %cst_100 : f32 to vector<9x64xf32>
    %333 = arith.subf %332, %331 : vector<9x64xf32>
    %334 = arith.mulf %305, %333 : vector<9x64xf32>
    %cst_101 = arith.constant 1.000000e+00 : f32
    %335 = vector.broadcast %cst_101 : f32 to vector<9x64xf32>
    %336 = arith.addf %335, %334 : vector<9x64xf32>
    %337 = arith.mulf %298, %336 : vector<9x64xf32>
    %338 = arith.truncf %337 : vector<9x64xf32> to vector<9x64xbf16>
    %cst_102 = arith.constant dense<0.000000e+00> : vector<9x32xf32>
    %339 = tpu.matmul %338, %195, %cst_102 {dimension_numbers = #tpu.dot_dimension_numbers<[1], [0], [0], [1], [0, 0, 1, 1], [], []>} : vector<9x64xbf16>, vector<64x32xbf16>, vector<9x32xf32> -> vector<9x32xf32>
    %340 = vector.broadcast %205 : vector<1x32xf32> to vector<9x32xf32>
    %341 = arith.addf %339, %340 : vector<9x32xf32>
    %342 = arith.addf %292, %341 : vector<9x32xf32>
    %cst_103 = arith.constant dense<0.000000e+00> : vector<9xf32>
    %343 = vector.multi_reduction <add>, %342, %cst_103 [1] : vector<9x32xf32> to vector<9xf32>
    %344 = vector.shape_cast %343 : vector<9xf32> to vector<9x1xf32>
    %cst_104 = arith.constant 3.200000e+01 : f32
    %345 = vector.broadcast %cst_104 : f32 to vector<9x1xf32>
    %346 = arith.divf %344, %345 : vector<9x1xf32>
    %347 = vector.broadcast %346 : vector<9x1xf32> to vector<9x32xf32>
    %348 = arith.subf %342, %347 : vector<9x32xf32>
    %349 = vector.broadcast %346 : vector<9x1xf32> to vector<9x32xf32>
    %350 = arith.subf %342, %349 : vector<9x32xf32>
    %351 = arith.mulf %348, %350 : vector<9x32xf32>
    %cst_105 = arith.constant dense<0.000000e+00> : vector<9xf32>
    %352 = vector.multi_reduction <add>, %351, %cst_105 [1] : vector<9x32xf32> to vector<9xf32>
    %353 = vector.shape_cast %352 : vector<9xf32> to vector<9x1xf32>
    %cst_106 = arith.constant 3.200000e+01 : f32
    %354 = vector.broadcast %cst_106 : f32 to vector<9x1xf32>
    %355 = arith.divf %353, %354 : vector<9x1xf32>
    %356 = vector.broadcast %346 : vector<9x1xf32> to vector<9x32xf32>
    %357 = arith.subf %342, %356 : vector<9x32xf32>
    %cst_107 = arith.constant 9.99999974E-6 : f32
    %358 = vector.broadcast %cst_107 : f32 to vector<9x1xf32>
    %359 = arith.addf %355, %358 : vector<9x1xf32>
    %360 = math.rsqrt %359 : vector<9x1xf32>
    %361 = vector.broadcast %360 : vector<9x1xf32> to vector<9x32xf32>
    %362 = arith.mulf %357, %361 : vector<9x32xf32>
    %363 = vector.broadcast %202 : vector<1x32xf32> to vector<9x32xf32>
    %364 = arith.mulf %362, %363 : vector<9x32xf32>
    %365 = vector.broadcast %203 : vector<1x32xf32> to vector<9x32xf32>
    %366 = arith.addf %364, %365 : vector<9x32xf32>
    %c0_108 = arith.constant 0 : index
    %c0_109 = arith.constant 0 : index
    %c0_110 = arith.constant 0 : index
    %367 = vector.load %arg7[%c0_108, %c0_109, %c0_110] : memref<1x9x32xf32, #tpu.memory_space<vmem>>, vector<1x9x32xf32>
    %368 = vector.shape_cast %367 : vector<1x9x32xf32> to vector<9x32xf32>
    %369 = vector.shape_cast %366 : vector<9x32xf32> to vector<1x9x32xf32>
    tpu.vector_store %arg7[%c0_108, %c0_109, %c0_110], %369 {strides = array<i32>} : memref<1x9x32xf32, #tpu.memory_space<vmem>>, vector<1x9x32xf32>,
    return
  }
  func.func @transform_0(%arg0: i32) -> (i32, i32, i32) {
    %c0_i32 = arith.constant 0 : i32
    %c0_i32_0 = arith.constant 0 : i32
    %c0_i32_1 = arith.constant 0 : i32
    return %arg0, %c0_i32, %c0_i32_0 : i32, i32, i32
  }
  func.func @transform_1(%arg0: i32) -> (i32, i32, i32) {
    %c0_i32 = arith.constant 0 : i32
    %c0_i32_0 = arith.constant 0 : i32
    %c0_i32_1 = arith.constant 0 : i32
    %c0_i32_2 = arith.constant 0 : i32
    return %c0_i32, %c0_i32_0, %c0_i32_1 : i32, i32, i32
  }
  func.func @transform_2(%arg0: i32) -> (i32, i32, i32) {
    %c0_i32 = arith.constant 0 : i32
    %c0_i32_0 = arith.constant 0 : i32
    %c0_i32_1 = arith.constant 0 : i32
    %c0_i32_2 = arith.constant 0 : i32
    return %c0_i32, %c0_i32_0, %c0_i32_1 : i32, i32, i32
  }
  func.func @transform_3(%arg0: i32) -> (i32, i32, i32) {
    %c0_i32 = arith.constant 0 : i32
    %c0_i32_0 = arith.constant 0 : i32
    %c0_i32_1 = arith.constant 0 : i32
    %c0_i32_2 = arith.constant 0 : i32
    return %c0_i32, %c0_i32_0, %c0_i32_1 : i32, i32, i32
  }
  func.func @transform_4(%arg0: i32) -> (i32, i32, i32) {
    %c0_i32 = arith.constant 0 : i32
    %c0_i32_0 = arith.constant 0 : i32
    %c0_i32_1 = arith.constant 0 : i32
    %c0_i32_2 = arith.constant 0 : i32
    return %c0_i32, %c0_i32_0, %c0_i32_1 : i32, i32, i32
  }
  func.func @transform_5(%arg0: i32) -> (i32, i32, i32) {
    %c0_i32 = arith.constant 0 : i32
    %c0_i32_0 = arith.constant 0 : i32
    %c0_i32_1 = arith.constant 0 : i32
    %c0_i32_2 = arith.constant 0 : i32
    return %c0_i32, %c0_i32_0, %c0_i32_1 : i32, i32, i32
  }
  func.func @transform_6(%arg0: i32) -> (i32, i32, i32) {
    %c0_i32 = arith.constant 0 : i32
    %c0_i32_0 = arith.constant 0 : i32
    %c0_i32_1 = arith.constant 0 : i32
    return %arg0, %c0_i32, %c0_i32_0 : i32, i32, i32
  }
}

</mosaic_0001>

<llo_original>
// kernel: tpu_custom_call.1
$region0: #{tpu_custom_call.1}
  #allocation0 [shape = 'u32[]', space=smem, size = 0x4, offset = 0x4, fixed_abs, tag = 'smem constant byte address 0x4 - core index']
  #allocation1 [shape = 'u32[144,128]{1,0:T(1,128)}', space=vmem, size = 0x12000, scoped, tag = 'internal scratch']
  #allocation2 [shape = 'f32[9,32]{1,0:T(8,128)}', space=vmem, size = 0x2000, scoped, tag = 'scratch operand']
  %s0 = inlined_call_operand.hbm [shape: f32[2,8,32], index: 0, kind: input, shape index: {}]
  %s1 = inlined_call_operand.vmem [shape: bf16[2,32,96], index: 1, kind: input, shape index: {}]
  %s2 = inlined_call_operand.vmem [shape: bf16[2,32,32], index: 2, kind: input, shape index: {}]
  %s3 = inlined_call_operand.vmem [shape: bf16[2,32,64], index: 3, kind: input, shape index: {}]
  %s4 = inlined_call_operand.vmem [shape: bf16[2,64,32], index: 4, kind: input, shape index: {}]
  %s5 = inlined_call_operand.vmem [shape: f32[2,8,96], index: 5, kind: input, shape index: {}]
  %s6 = inlined_call_operand.vmem [shape: f32[2,9,32], index: 6, kind: output, shape index: {}]
  %s7 = sld [smem:[#allocation0]]
  $region61: #{tpu_custom_call.1} parent=0
    _
  %s9 = ssub.s32 1, %s7
  %s10 = scalar_select 0, %s9, %s7
  $region1: #{tpu_custom_call.1} parent=0
    #allocation3 [shape = 'u8[8192]{0}', space=vmem, size = 0x2000, scoped, tag = 'input window, operand 0']
    #allocation4 [shape = 's32[2]{0}', space=sflag, size = 0x8, scoped, tag = 'scoped memory for tpu_custom_call.1']
    %11 = vsyncpa [#allocation4], 0
    %s12 = scalar_lea.sflag [#allocation4], 1
    %13 = vsyncpa %s12, 0
    loop: start=0, step=1, limit=4
    $region2: #{tpu_custom_call.1} parent=1 // loop_pre_header
      _
    $region3: #{tpu_custom_call.1} parent=1 // loop_header
      %s15 = sphi 0, %s19
      %p16 = scmp.ge.s32.totalorder %s15, 4
      %s25 = sphi 0, %s27
      %s28 = sphi 0, %s25
      %s29 = sphi 0, %s28
      %s45 = sphi 0, %s29
      %s49 = sphi 0, %s49
      %s51 = sphi 0, %s49
      %s52 = sphi 0, %s51
      %s66 = sphi 0, %s52
      %s70 = sphi 0, %s70
      %s72 = sphi 0, %s70
      %s73 = sphi 0, %s72
      %s87 = sphi 0, %s73
      %s91 = sphi 0, %s91
      %s93 = sphi 0, %s91
      %s94 = sphi 0, %s93
      %s108 = sphi 0, %s94
      %s112 = sphi 0, %s112
      %s114 = sphi 0, %s112
      %s115 = sphi 0, %s114
      %s129 = sphi 0, %s115
      %s133 = sphi 0, %s133
      %s135 = sphi 0, %s133
      %s136 = sphi 0, %s135
      %s150 = sphi 0, %s136
      %s156 = sphi 0, %s158
      %s159 = sphi 0, %s156
      %s160 = sphi 0, %s159
      %s176 = sphi 0, %s160
    $region4: #{tpu_custom_call.1} parent=1 // loop_header_branch
      %18 = sbr.rel (%p16) target = $region8
    $region5: #{tpu_custom_call.1} parent=1 // loop_body
      %s20 = ssub.s32 %s15, 1
      %s21 = ssub.s32 %s15, 2
      %s22 = sadd.s32 %s15, 1
      %s23 = ssub.s32 %s15, %s22
      %p24 = scmp.eq.s32.totalorder %s23, 0
      %s26 = sadd.s32 %s25, 1
      %s27 = scalar_select %p24, %s25, %s26
      %p30 = pneg %p24
      %p31 = scmp.eq.s32.totalorder %s15, 1
      %p32 = por %p30, %p31
      %p33 = scmp.ne.s32.totalorder %s25, %s28
      %p34 = scmp.eq.s32.totalorder %s15, 0
      %p35 = por %p33, %p34
      %p36 = scmp.ne.s32.totalorder %s25, %s28
      %p37 = scmp.eq.s32.totalorder %s20, 1
      %p38 = por %p36, %p37
      %p39 = scmp.ne.s32.totalorder %s28, %s29
      %p40 = scmp.eq.s32.totalorder %s20, 0
      %p41 = por %p39, %p40
      %p42 = scmp.ne.s32.totalorder %s28, %s29
      %p43 = scmp.eq.s32.totalorder %s21, 1
      %p44 = por %p42, %p43
      %p46 = scmp.ne.s32.totalorder %s29, %s45
      %p47 = scmp.eq.s32.totalorder %s21, 0
      %p48 = por %p46, %p47
      %s50 = sadd.s32 %s49, 1
      %p53 = scmp.eq.s32.totalorder %s15, 1
      %p54 = scmp.ne.s32.totalorder %s49, %s51
      %p55 = scmp.eq.s32.totalorder %s15, 0
      %p56 = por %p54, %p55
      %p57 = scmp.ne.s32.totalorder %s49, %s51
      %p58 = scmp.eq.s32.totalorder %s20, 1
      %p59 = por %p57, %p58
      %p60 = scmp.ne.s32.totalorder %s51, %s52
      %p61 = scmp.eq.s32.totalorder %s20, 0
      %p62 = por %p60, %p61
      %p63 = scmp.ne.s32.totalorder %s51, %s52
      %p64 = scmp.eq.s32.totalorder %s21, 1
      %p65 = por %p63, %p64
      %p67 = scmp.ne.s32.totalorder %s52, %s66
      %p68 = scmp.eq.s32.totalorder %s21, 0
      %p69 = por %p67, %p68
      %s71 = sadd.s32 %s70, 1
      %p74 = scmp.eq.s32.totalorder %s15, 1
      %p75 = scmp.ne.s32.totalorder %s70, %s72
      %p76 = scmp.eq.s32.totalorder %s15, 0
      %p77 = por %p75, %p76
      %p78 = scmp.ne.s32.totalorder %s70, %s72
      %p79 = scmp.eq.s32.totalorder %s20, 1
      %p80 = por %p78, %p79
      %p81 = scmp.ne.s32.totalorder %s72, %s73
      %p82 = scmp.eq.s32.totalorder %s20, 0
      %p83 = por %p81, %p82
      %p84 = scmp.ne.s32.totalorder %s72, %s73
      %p85 = scmp.eq.s32.totalorder %s21, 1
      %p86 = por %p84, %p85
      %p88 = scmp.ne.s32.totalorder %s73, %s87
      %p89 = scmp.eq.s32.totalorder %s21, 0
      %p90 = por %p88, %p89
      %s92 = sadd.s32 %s91, 1
      %p95 = scmp.eq.s32.totalorder %s15, 1
      %p96 = scmp.ne.s32.totalorder %s91, %s93
      %p97 = scmp.eq.s32.totalorder %s15, 0
      %p98 = por %p96, %p97
      %p99 = scmp.ne.s32.totalorder %s91, %s93
      %p100 = scmp.eq.s32.totalorder %s20, 1
      %p101 = por %p99, %p100
      %p102 = scmp.ne.s32.totalorder %s93, %s94
      %p103 = scmp.eq.s32.totalorder %s20, 0
      %p104 = por %p102, %p103
      %p105 = scmp.ne.s32.totalorder %s93, %s94
      %p106 = scmp.eq.s32.totalorder %s21, 1
      %p107 = por %p105, %p106
      %p109 = scmp.ne.s32.totalorder %s94, %s108
      %p110 = scmp.eq.s32.totalorder %s21, 0
      %p111 = por %p109, %p110
      %s113 = sadd.s32 %s112, 1
      %p116 = scmp.eq.s32.totalorder %s15, 1
      %p117 = scmp.ne.s32.totalorder %s112, %s114
      %p118 = scmp.eq.s32.totalorder %s15, 0
      %p119 = por %p117, %p118
      %p120 = scmp.ne.s32.totalorder %s112, %s114
      %p121 = scmp.eq.s32.totalorder %s20, 1
      %p122 = por %p120, %p121
      %p123 = scmp.ne.s32.totalorder %s114, %s115
      %p124 = scmp.eq.s32.totalorder %s20, 0
      %p125 = por %p123, %p124
      %p126 = scmp.ne.s32.totalorder %s114, %s115
      %p127 = scmp.eq.s32.totalorder %s21, 1
      %p128 = por %p126, %p127
      %p130 = scmp.ne.s32.totalorder %s115, %s129
      %p131 = scmp.eq.s32.totalorder %s21, 0
      %p132 = por %p130, %p131
      %s134 = sadd.s32 %s133, 1
      %p137 = scmp.eq.s32.totalorder %s15, 1
      %p138 = scmp.ne.s32.totalorder %s133, %s135
      %p139 = scmp.eq.s32.totalorder %s15, 0
      %p140 = por %p138, %p139
      %p141 = scmp.ne.s32.totalorder %s133, %s135
      %p142 = scmp.eq.s32.totalorder %s20, 1
      %p143 = por %p141, %p142
      %p144 = scmp.ne.s32.totalorder %s135, %s136
      %p145 = scmp.eq.s32.totalorder %s20, 0
      %p146 = por %p144, %p145
      %p147 = scmp.ne.s32.totalorder %s135, %s136
      %p148 = scmp.eq.s32.totalorder %s21, 1
      %p149 = por %p147, %p148
      %p151 = scmp.ne.s32.totalorder %s136, %s150
      %p152 = scmp.eq.s32.totalorder %s21, 0
      %p153 = por %p151, %p152
      %s154 = ssub.s32 %s15, %s22
      %p155 = scmp.eq.s32.totalorder %s154, 0
      %s157 = sadd.s32 %s156, 1
      %s158 = scalar_select %p155, %s156, %s157
      %p161 = pneg %p155
      %p162 = scmp.eq.s32.totalorder %s15, 1
      %p163 = por %p161, %p162
      %p164 = scmp.ne.s32.totalorder %s156, %s159
      %p165 = scmp.eq.s32.totalorder %s15, 0
      %p166 = por %p164, %p165
      %p167 = scmp.ne.s32.totalorder %s156, %s159
      %p168 = scmp.eq.s32.totalorder %s20, 1
      %p169 = por %p167, %p168
      %p170 = scmp.ne.s32.totalorder %s159, %s160
      %p171 = scmp.eq.s32.totalorder %s20, 0
      %p172 = por %p170, %p171
      %p173 = scmp.ne.s32.totalorder %s159, %s160
      %p174 = scmp.eq.s32.totalorder %s21, 1
      %p175 = por %p173, %p174
      %p177 = scmp.ne.s32.totalorder %s160, %s176
      %p178 = scmp.eq.s32.totalorder %s21, 0
      %p179 = por %p177, %p178
      %p180 = scmp.le.s32.totalorder 1, %s15
      %p181 = scmp.lt.s32.totalorder %s15, 3
      %p182 = pnand %p180, %p181
      %p183 = pneg %p182
      // Predicated region
      $region9: #{tpu_custom_call.1} parent=5 // pred_check
        _
      $region10: #{tpu_custom_call.1} parent=5 // pred_check_branch
        %185 = sbr.rel (%p182) target = $region12
      $region11: #{tpu_custom_call.1} parent=5 // pred_region
        %s186 = ssub.s32 %s15, 1
        // Predicated region
        $region13: #{tpu_custom_call.1} parent=11 // pred_check
          %p187 = pneg %p62
        $region14: #{tpu_custom_call.1} parent=11 // pred_check_branch
          %189 = sbr.rel (%p187) target = $region16
        $region15: #{tpu_custom_call.1} parent=11 // pred_region
          _
        $region16: #{tpu_custom_call.1} parent=11 // pred_fallthru
          _
        // Predicated region
        $region17: #{tpu_custom_call.1} parent=11 // pred_check
          %p190 = pneg %p83
        $region18: #{tpu_custom_call.1} parent=11 // pred_check_branch
          %192 = sbr.rel (%p190) target = $region20
        $region19: #{tpu_custom_call.1} parent=11 // pred_region
          _
        $region20: #{tpu_custom_call.1} parent=11 // pred_fallthru
          _
        // Predicated region
        $region21: #{tpu_custom_call.1} parent=11 // pred_check
          %p193 = pneg %p104
        $region22: #{tpu_custom_call.1} parent=11 // pred_check_branch
          %195 = sbr.rel (%p193) target = $region24
        $region23: #{tpu_custom_call.1} parent=11 // pred_region
          _
        $region24: #{tpu_custom_call.1} parent=11 // pred_fallthru
          _
        // Predicated region
        $region25: #{tpu_custom_call.1} parent=11 // pred_check
          %p196 = pneg %p125
        $region26: #{tpu_custom_call.1} parent=11 // pred_check_branch
          %198 = sbr.rel (%p196) target = $region28
        $region27: #{tpu_custom_call.1} parent=11 // pred_region
          _
        $region28: #{tpu_custom_call.1} parent=11 // pred_fallthru
          _
        // Predicated region
        $region29: #{tpu_custom_call.1} parent=11 // pred_check
          %p199 = pneg %p146
        $region30: #{tpu_custom_call.1} parent=11 // pred_check_branch
          %201 = sbr.rel (%p199) target = $region32
        $region31: #{tpu_custom_call.1} parent=11 // pred_region
          _
        $region32: #{tpu_custom_call.1} parent=11 // pred_fallthru
          _
      $region12: #{tpu_custom_call.1} parent=5 // pred_fallthru
        _
      %p202 = scmp.lt.s32.totalorder %s15, 2
      // Predicated region
      $region33: #{tpu_custom_call.1} parent=5 // pred_check
        %p203 = pneg %p202
      $region34: #{tpu_custom_call.1} parent=5 // pred_check_branch
        %205 = sbr.rel (%p203) target = $region36
      $region35: #{tpu_custom_call.1} parent=5 // pred_region
        // Predicated region
        $region37: #{tpu_custom_call.1} parent=35 // pred_check
          %p206 = pneg %p35
        $region38: #{tpu_custom_call.1} parent=35 // pred_check_branch
          %208 = sbr.rel (%p206) target = $region40
        $region39: #{tpu_custom_call.1} parent=35 // pred_region
          %s209 = sand.u32 %s25, 1
          %s210 = scalar_lea.sflag [#allocation4], %s209
          %s211 = sand.u32 %s25, 1
          %s212 = smul.addr %s211, 8
          %s213 = scalar_lea.vmem [#allocation3], %s212
          %s215 = ssub.s32 128, 128
          %216 = vsyncadd %s210, %s215
          %s217 = smul.addr %s15, 128
          %s218 = scalar_lea.hbm %s0, %s217
          %s220 = sshll.u32 %s213, 4
          %s221 = int_to_ptr.vmem [resolvable:$true] %s220
          %223 = dma.hbm_to_vmem [thread:$0]  %s218, 128, %s221, %s210
        $region40: #{tpu_custom_call.1} parent=35 // pred_fallthru
          _
      $region36: #{tpu_custom_call.1} parent=5 // pred_fallthru
        _
      %p224 = scmp.le.s32.totalorder 1, %s15
      %p225 = scmp.lt.s32.totalorder %s15, 3
      %p226 = pnand %p224, %p225
      %p227 = pneg %p226
      // Predicated region
      $region41: #{tpu_custom_call.1} parent=5 // pred_check
        _
      $region42: #{tpu_custom_call.1} parent=5 // pred_check_branch
        %229 = sbr.rel (%p226) target = $region44
      $region43: #{tpu_custom_call.1} parent=5 // pred_region
        %s230 = ssub.s32 %s15, 1
        %s231 = sand.u32 %s28, 1
        %s232 = scalar_lea.sflag [#allocation4], %s231
        %s233 = sand.u32 %s28, 1
        %s234 = smul.addr %s233, 8
        %s235 = scalar_lea.vmem [#allocation3], %s234
        // Predicated region
        $region45: #{tpu_custom_call.1} parent=43 // pred_check
          %p236 = pneg %p41
        $region46: #{tpu_custom_call.1} parent=43 // pred_check_branch
          %238 = sbr.rel (%p236) target = $region48
        $region47: #{tpu_custom_call.1} parent=43 // pred_region
          %239 = dma.done %s232, 128
        $region48: #{tpu_custom_call.1} parent=43 // pred_fallthru
          _
        %s240 = sand.u32 %s28, 1
        %s241 = scalar_lea.sflag [#allocation4], %s240
        %s242 = sand.u32 %s28, 1
        %s243 = smul.addr %s242, 8
        %s244 = scalar_lea.vmem [#allocation3], %s243
        %p245 = pneg %p41
        %p246 = pneg %p38
        %p247 = pneg %p62
        %p248 = pneg %p59
        %p249 = pneg %p83
        %p250 = pneg %p80
        %p251 = pneg %p104
        %p252 = pneg %p101
        %p253 = pneg %p125
        %p254 = pneg %p122
        %p255 = pneg %p146
        %p256 = pneg %p143
        %p257 = pneg %p172
        %p258 = pneg %p169
        %p259 = scmp.lt.s32.totalorder %s20, 1
        %s260 = scalar_select %p259, %s20, 1
        %s261 = smul.addr %s260, 2
        %s262 = smul.addr %s261, 8
        %s263 = scalar_lea.vmem %s6, %s262
        %p264 = scmp.lt.s32.totalorder %s20, 1
        %s265 = scalar_select %p264, %s20, 1
        %s266 = smul.addr %s265, 2
        %s267 = smul.addr %s266, 8
        %s268 = scalar_lea.vmem %s6, %s267
        %v270 = vld [vmem:[%s235] sm:$0xff]
        %vm271 = vcmask 261120
        %v272 = vsel %vm271, %v270, 0.0
        %v273 = vrot.slane %v272, 4
        %v274 = vadd.f32 %v272, %v273
        %v275 = vrot.slane %v274, 2
        %v276 = vadd.f32 %v274, %v275
        %v277 = vrot.slane %v276, 1
        %v278 = vadd.f32 %v276, %v277
        %v279 = vrcp.pop 8.0
        %v280 = vmul.f32 %v278, %v279
        %vm281 = vcmask 253952
        %282 = vst.msk [vmem:[#allocation2] sm:$0x1] %vm281, %v280
        %283 = vst.msk [vmem:[#allocation2 + $0x1] sm:$0xff] %vm271, %v270
        %v284 = vld [vmem:[#allocation2] sm:$0xff]
        %v285 = vld [vmem:[#allocation2 + $0x8] sm:$0x1]
        %v286 = vld [vmem:[%s1] sm:$0xf]
        %v287 = vld [vmem:[%s1 + $0x4] sm:$0xf]
        %v288 = vld [vmem:[%s1 + $0x8] sm:$0xf]
        %v289 = vld [vmem:[%s1 + $0xc] sm:$0xf]
        %v290 = vld [vmem:[%s2] sm:$0xf]
        %v291 = vld [vmem:[%s2 + $0x4] sm:$0xf]
        %v292 = vld [vmem:[%s2 + $0x8] sm:$0xf]
        %v293 = vld [vmem:[%s2 + $0xc] sm:$0xf]
        %v294 = vld [vmem:[%s3] sm:$0xf]
        %v295 = vld [vmem:[%s3 + $0x4] sm:$0xf]
        %v296 = vld [vmem:[%s3 + $0x8] sm:$0xf]
        %v297 = vld [vmem:[%s3 + $0xc] sm:$0xf]
        %v298 = vld [vmem:[%s4] sm:$0xf]
        %v299 = vld [vmem:[%s4 + $0x4] sm:$0xf]
        %v300 = vld [vmem:[%s4 + $0x8] sm:$0xf]
        %v301 = vld [vmem:[%s4 + $0xc] sm:$0xf]
        %v302 = vld [vmem:[%s4 + $0x10] sm:$0xf]
        %v303 = vld [vmem:[%s4 + $0x14] sm:$0xf]
        %v304 = vld [vmem:[%s4 + $0x18] sm:$0xf]
        %v305 = vld [vmem:[%s4 + $0x1c] sm:$0xf]
        %v306 = vld [vmem:[%s5] sm:$0xff]
        %v307 = vpack.c.bf16 %v285, %v284
        %v308 = vlaneseq
        %v309 = vshrl.u32 %v308, 7
        %v310 = vsub.s32 0, %v309
        %v311 = vrot.slane %v306, %v310
        %v316 = vunpack.c.l.b16 %v286
        %v317 = vunpack.c.l.b16 %v287
        %v318 = vunpack.c.l.b16 %v288
        %v319 = vunpack.c.l.b16 %v289
        %v320 = vpack.c.b16 %v317, %v316
        %v321 = vpack.c.b16 %v319, %v318
        %v325 = vsel %vm271, %v307, 0
        %327 = vmatprep.subr.bf16.mxu0 0
        %328 = vmatpush1.bf16.msra.mxu0 %v320
        %329 = vmatprep.subr.bf16.mxu0 0
        %330 = vmatpush1.bf16.msra.mxu0 %v321
        %331 = vmatprep.subr.bf16.mxu0 0
        %332 = vmatpush1.bf16.msra.mxu0 0
        %333 = vmatprep.subr.bf16.mxu0 0
        %334 = vmatpush1.bf16.msra.mxu0 0
        %335 = vmatprep.subr.bf16.mxu0 0
        %336 = vmatpush1.bf16.msra.mxu0 0
        %337 = vmatprep.subr.bf16.mxu0 0
        %338 = vmatpush1.bf16.msra.mxu0 0
        %339 = vmatprep.subr.bf16.mxu0 0
        %340 = vmatpush1.bf16.msra.mxu0 0
        %341 = vmatprep.subr.bf16.mxu0 0
        %342 = vmatpush1.bf16.msra.mxu0 0
        %343 = vmatprep.subr.bf16.mxu0 0
        %344 = vmatpush1.bf16.msra.mxu0 0
        %345 = vmatprep.subr.bf16.mxu0 0
        %346 = vmatpush1.bf16.msra.mxu0 0
        %347 = vmatprep.subr.bf16.mxu0 0
        %348 = vmatpush1.bf16.msra.mxu0 0
        %349 = vmatprep.subr.bf16.mxu0 0
        %350 = vmatpush1.bf16.msra.mxu0 0
        %351 = vmatprep.subr.bf16.mxu0 0
        %352 = vmatpush1.bf16.msra.mxu0 0
        %353 = vmatprep.subr.bf16.mxu0 0
        %354 = vmatpush1.bf16.msra.mxu0 0
        %355 = vmatprep.subr.bf16.mxu0 0
        %356 = vmatpush1.bf16.msra.mxu0 0
        %357 = vmatprep.subr.bf16.mxu0 0
        %358 = vmatpush1.bf16.msra.mxu0 0
        %359 = vmatprep.mubr.bf16.mxu0 0
        %360 = vmatmul.mubr.bf16.gmra.mrb[0].mxu0 %v325
        %v361 = vpop.f32.mrb[0].mxu0
        %v362 = vadd.f32 %v311, %v361
        %v363 = vpop.f32.mrb[0].mxu0
        %v364 = vpop.f32.mrb[0].mxu0
        %v365 = vadd.f32 %v311, %v364
        %v366 = vpop.f32.mrb[0].mxu0
        %367 = vdwg.mxu0
        %370 = vrot.lane.b32.xlu0 %v362, 120
        %v371 = vpop.permute.xlu0 %370
        %372 = vrot.lane.b32.xlu0 %v365, 120
        %v373 = vpop.permute.xlu0 %372
        %376 = vrot.lane.b32.xlu0 %v362, 112
        %v377 = vpop.permute.xlu0 %376
        %378 = vrot.lane.b32.xlu0 %v365, 112
        %v379 = vpop.permute.xlu0 %378
        %382 = vrot.lane.b32.xlu0 %v362, 104
        %v383 = vpop.permute.xlu0 %382
        %384 = vrot.lane.b32.xlu0 %v365, 104
        %v385 = vpop.permute.xlu0 %384
        %v388 = vpack.c.bf16 %v365, %v362
        %v389 = vpack.c.bf16 %v373, %v371
        %v390 = vpack.c.bf16 %v379, %v377
        %v391 = vpack.c.bf16 %v385, %v383
        %393 = vrot.lane.b32.xlu0 %v388, 96
        %v394 = vpop.permute.xlu0 %393
        %vm395 = vcmask 64512
        %v397 = vsel %vm395, %v388, 0
        %v400 = vsel %vm395, %v394, 0
        %402 = vmatprep.subr.bf16.mxu0 0
        %403 = vmatpush1.bf16.xpose.msra.mxu0 %v400
        %404 = vmatprep.subr.bf16.mxu0 0
        %405 = vmatpush1.bf16.xpose.msra.mxu0 0
        %406 = vmatprep.subr.bf16.mxu0 0
        %407 = vmatpush1.bf16.xpose.msra.mxu0 0
        %408 = vmatprep.subr.bf16.mxu0 0
        %409 = vmatpush1.bf16.xpose.msra.mxu0 0
        %410 = vmatprep.subr.bf16.mxu0 0
        %411 = vmatpush1.bf16.xpose.msra.mxu0 0
        %412 = vmatprep.subr.bf16.mxu0 0
        %413 = vmatpush1.bf16.xpose.msra.mxu0 0
        %414 = vmatprep.subr.bf16.mxu0 0
        %415 = vmatpush1.bf16.xpose.msra.mxu0 0
        %416 = vmatprep.subr.bf16.mxu0 0
        %417 = vmatpush1.bf16.xpose.msra.mxu0 0
        %418 = vmatprep.subr.bf16.mxu0 0
        %419 = vmatpush1.bf16.xpose.msra.mxu0 0
        %420 = vmatprep.subr.bf16.mxu0 0
        %421 = vmatpush1.bf16.xpose.msra.mxu0 0
        %422 = vmatprep.subr.bf16.mxu0 0
        %423 = vmatpush1.bf16.xpose.msra.mxu0 0
        %424 = vmatprep.subr.bf16.mxu0 0
        %425 = vmatpush1.bf16.xpose.msra.mxu0 0
        %426 = vmatprep.subr.bf16.mxu0 0
        %427 = vmatpush1.bf16.xpose.msra.mxu0 0
        %428 = vmatprep.subr.bf16.mxu0 0
        %429 = vmatpush1.bf16.xpose.msra.mxu0 0
        %430 = vmatprep.subr.bf16.mxu0 0
        %431 = vmatpush1.bf16.xpose.msra.mxu0 0
        %432 = vmatprep.subr.bf16.mxu0 0
        %433 = vmatpush1.bf16.xpose.msra.mxu0 0
        %434 = vmatprep.mubr.bf16.mxu0 0
        %435 = vmatmul.mubr.bf16.gmra.mrb[0].mxu0 %v397
        %v436 = vpop.f32.mrb[0].mxu0
        %v437 = vadd.f32 0.0, %v436
        %v438 = vpop.f32.mrb[0].mxu0
        %v439 = vpop.f32.mrb[0].mxu0
        %v440 = vadd.f32 0.0, %v439
        %v441 = vpop.f32.mrb[0].mxu0
        %442 = vdwg.mxu0
        %444 = vrot.lane.b32.xlu0 %v389, 96
        %v445 = vpop.permute.xlu0 %444
        %v447 = vsel %vm395, %v389, 0
        %v450 = vsel %vm395, %v445, 0
        %452 = vmatprep.subr.bf16.mxu0 0
        %453 = vmatpush1.bf16.xpose.msra.mxu0 %v450
        %454 = vmatprep.subr.bf16.mxu0 0
        %455 = vmatpush1.bf16.xpose.msra.mxu0 0
        %456 = vmatprep.subr.bf16.mxu0 0
        %457 = vmatpush1.bf16.xpose.msra.mxu0 0
        %458 = vmatprep.subr.bf16.mxu0 0
        %459 = vmatpush1.bf16.xpose.msra.mxu0 0
        %460 = vmatprep.subr.bf16.mxu0 0
        %461 = vmatpush1.bf16.xpose.msra.mxu0 0
        %462 = vmatprep.subr.bf16.mxu0 0
        %463 = vmatpush1.bf16.xpose.msra.mxu0 0
        %464 = vmatprep.subr.bf16.mxu0 0
        %465 = vmatpush1.bf16.xpose.msra.mxu0 0
        %466 = vmatprep.subr.bf16.mxu0 0
        %467 = vmatpush1.bf16.xpose.msra.mxu0 0
        %468 = vmatprep.subr.bf16.mxu0 0
        %469 = vmatpush1.bf16.xpose.msra.mxu0 0
        %470 = vmatprep.subr.bf16.mxu0 0
        %471 = vmatpush1.bf16.xpose.msra.mxu0 0
        %472 = vmatprep.subr.bf16.mxu0 0
        %473 = vmatpush1.bf16.xpose.msra.mxu0 0
        %474 = vmatprep.subr.bf16.mxu0 0
        %475 = vmatpush1.bf16.xpose.msra.mxu0 0
        %476 = vmatprep.subr.bf16.mxu0 0
        %477 = vmatpush1.bf16.xpose.msra.mxu0 0
        %478 = vmatprep.subr.bf16.mxu0 0
        %479 = vmatpush1.bf16.xpose.msra.mxu0 0
        %480 = vmatprep.subr.bf16.mxu0 0
        %481 = vmatpush1.bf16.xpose.msra.mxu0 0
        %482 = vmatprep.subr.bf16.mxu0 0
        %483 = vmatpush1.bf16.xpose.msra.mxu0 0
        %484 = vmatprep.mubr.bf16.mxu0 0
        %485 = vmatmul.mubr.bf16.gmra.mrb[0].mxu0 %v447
        %v486 = vpop.f32.mrb[0].mxu0
        %v487 = vadd.f32 0.0, %v486
        %v488 = vpop.f32.mrb[0].mxu0
        %v489 = vpop.f32.mrb[0].mxu0
        %v490 = vadd.f32 0.0, %v489
        %v491 = vpop.f32.mrb[0].mxu0
        %492 = vdwg.mxu0
        %494 = vrot.lane.b32.xlu0 %v390, 96
        %v495 = vpop.permute.xlu0 %494
        %v497 = vsel %vm395, %v390, 0
        %v500 = vsel %vm395, %v495, 0
        %502 = vmatprep.subr.bf16.mxu0 0
        %503 = vmatpush1.bf16.xpose.msra.mxu0 %v500
        %504 = vmatprep.subr.bf16.mxu0 0
        %505 = vmatpush1.bf16.xpose.msra.mxu0 0
        %506 = vmatprep.subr.bf16.mxu0 0
        %507 = vmatpush1.bf16.xpose.msra.mxu0 0
        %508 = vmatprep.subr.bf16.mxu0 0
        %509 = vmatpush1.bf16.xpose.msra.mxu0 0
        %510 = vmatprep.subr.bf16.mxu0 0
        %511 = vmatpush1.bf16.xpose.msra.mxu0 0
        %512 = vmatprep.subr.bf16.mxu0 0
        %513 = vmatpush1.bf16.xpose.msra.mxu0 0
        %514 = vmatprep.subr.bf16.mxu0 0
        %515 = vmatpush1.bf16.xpose.msra.mxu0 0
        %516 = vmatprep.subr.bf16.mxu0 0
        %517 = vmatpush1.bf16.xpose.msra.mxu0 0
        %518 = vmatprep.subr.bf16.mxu0 0
        %519 = vmatpush1.bf16.xpose.msra.mxu0 0
        %520 = vmatprep.subr.bf16.mxu0 0
        %521 = vmatpush1.bf16.xpose.msra.mxu0 0
        %522 = vmatprep.subr.bf16.mxu0 0
        %523 = vmatpush1.bf16.xpose.msra.mxu0 0
        %524 = vmatprep.subr.bf16.mxu0 0
        %525 = vmatpush1.bf16.xpose.msra.mxu0 0
        %526 = vmatprep.subr.bf16.mxu0 0
        %527 = vmatpush1.bf16.xpose.msra.mxu0 0
        %528 = vmatprep.subr.bf16.mxu0 0
        %529 = vmatpush1.bf16.xpose.msra.mxu0 0
        %530 = vmatprep.subr.bf16.mxu0 0
        %531 = vmatpush1.bf16.xpose.msra.mxu0 0
        %532 = vmatprep.subr.bf16.mxu0 0
        %533 = vmatpush1.bf16.xpose.msra.mxu0 0
        %534 = vmatprep.mubr.bf16.mxu0 0
        %535 = vmatmul.mubr.bf16.gmra.mrb[0].mxu0 %v497
        %v536 = vpop.f32.mrb[0].mxu0
        %v537 = vadd.f32 0.0, %v536
        %v538 = vpop.f32.mrb[0].mxu0
        %v539 = vpop.f32.mrb[0].mxu0
        %v540 = vadd.f32 0.0, %v539
        %v541 = vpop.f32.mrb[0].mxu0
        %542 = vdwg.mxu0
        %544 = vrot.lane.b32.xlu0 %v391, 96
        %v545 = vpop.permute.xlu0 %544
        %v547 = vsel %vm395, %v391, 0
        %v550 = vsel %vm395, %v545, 0
        %552 = vmatprep.subr.bf16.mxu0 0
        %553 = vmatpush1.bf16.xpose.msra.mxu0 %v550
        %554 = vmatprep.subr.bf16.mxu0 0
        %555 = vmatpush1.bf16.xpose.msra.mxu0 0
        %556 = vmatprep.subr.bf16.mxu0 0
        %557 = vmatpush1.bf16.xpose.msra.mxu0 0
        %558 = vmatprep.subr.bf16.mxu0 0
        %559 = vmatpush1.bf16.xpose.msra.mxu0 0
        %560 = vmatprep.subr.bf16.mxu0 0
        %561 = vmatpush1.bf16.xpose.msra.mxu0 0
        %562 = vmatprep.subr.bf16.mxu0 0
        %563 = vmatpush1.bf16.xpose.msra.mxu0 0
        %564 = vmatprep.subr.bf16.mxu0 0
        %565 = vmatpush1.bf16.xpose.msra.mxu0 0
        %566 = vmatprep.subr.bf16.mxu0 0
        %567 = vmatpush1.bf16.xpose.msra.mxu0 0
        %568 = vmatprep.subr.bf16.mxu0 0
        %569 = vmatpush1.bf16.xpose.msra.mxu0 0
        %570 = vmatprep.subr.bf16.mxu0 0
        %571 = vmatpush1.bf16.xpose.msra.mxu0 0
        %572 = vmatprep.subr.bf16.mxu0 0
        %573 = vmatpush1.bf16.xpose.msra.mxu0 0
        %574 = vmatprep.subr.bf16.mxu0 0
        %575 = vmatpush1.bf16.xpose.msra.mxu0 0
        %576 = vmatprep.subr.bf16.mxu0 0
        %577 = vmatpush1.bf16.xpose.msra.mxu0 0
        %578 = vmatprep.subr.bf16.mxu0 0
        %579 = vmatpush1.bf16.xpose.msra.mxu0 0
        %580 = vmatprep.subr.bf16.mxu0 0
        %581 = vmatpush1.bf16.xpose.msra.mxu0 0
        %582 = vmatprep.subr.bf16.mxu0 0
        %583 = vmatpush1.bf16.xpose.msra.mxu0 0
        %584 = vmatprep.mubr.bf16.mxu0 0
        %585 = vmatmul.mubr.bf16.gmra.mrb[0].mxu0 %v547
        %v586 = vpop.f32.mrb[0].mxu0
        %v587 = vadd.f32 0.0, %v586
        %v588 = vpop.f32.mrb[0].mxu0
        %v589 = vpop.f32.mrb[0].mxu0
        %v590 = vadd.f32 0.0, %v589
        %v591 = vpop.f32.mrb[0].mxu0
        %592 = vdwg.mxu0
        %v593 = vmul.f32 %v437, 0.35355338
        %v594 = vmul.f32 %v440, 0.35355338
        %v595 = vmul.f32 %v487, 0.35355338
        %v596 = vmul.f32 %v490, 0.35355338
        %v597 = vmul.f32 %v537, 0.35355338
        %v598 = vmul.f32 %v540, 0.35355338
        %v599 = vmul.f32 %v587, 0.35355338
        %v600 = vmul.f32 %v590, 0.35355338
        %vm601 = vcmask 72704
        %v602 = vsel %vm601, %v593, -inf
        %603 = vmax.xlane.f32.xlu0 %v602
        %v604 = vpop.xlane.xlu0 %603
        %vm605 = vcmask 65536
        %v606 = vsel %vm605, %v594, -inf
        %607 = vmax.xlane.f32.xlu0 %v606
        %v608 = vpop.xlane.xlu0 %607
        %v609 = vsel %vm601, %v595, -inf
        %610 = vmax.xlane.f32.xlu0 %v609
        %v611 = vpop.xlane.xlu0 %610
        %v612 = vsel %vm605, %v596, -inf
        %613 = vmax.xlane.f32.xlu0 %v612
        %v614 = vpop.xlane.xlu0 %613
        %v615 = vsel %vm601, %v597, -inf
        %616 = vmax.xlane.f32.xlu0 %v615
        %v617 = vpop.xlane.xlu0 %616
        %v618 = vsel %vm605, %v598, -inf
        %619 = vmax.xlane.f32.xlu0 %v618
        %v620 = vpop.xlane.xlu0 %619
        %v621 = vsel %vm601, %v599, -inf
        %622 = vmax.xlane.f32.xlu0 %v621
        %v623 = vpop.xlane.xlu0 %622
        %v624 = vsel %vm605, %v600, -inf
        %625 = vmax.xlane.f32.xlu0 %v624
        %v626 = vpop.xlane.xlu0 %625
        %v627 = vsub.f32 %v593, %v604
        %v628 = vsub.f32 %v594, %v608
        %v629 = vsub.f32 %v595, %v611
        %v630 = vsub.f32 %v596, %v614
        %v631 = vsub.f32 %v597, %v617
        %v632 = vsub.f32 %v598, %v620
        %v633 = vsub.f32 %v599, %v623
        %v634 = vsub.f32 %v600, %v626
        %v635 = vmul.f32 %v627, 1.442695
        %v636 = vpow.pop %v635
        %v637 = vmul.f32 %v628, 1.442695
        %v638 = vpow.pop %v637
        %v639 = vmul.f32 %v629, 1.442695
        %v640 = vpow.pop %v639
        %v641 = vmul.f32 %v630, 1.442695
        %v642 = vpow.pop %v641
        %v643 = vmul.f32 %v631, 1.442695
        %v644 = vpow.pop %v643
        %v645 = vmul.f32 %v632, 1.442695
        %v646 = vpow.pop %v645
        %v647 = vmul.f32 %v633, 1.442695
        %v648 = vpow.pop %v647
        %v649 = vmul.f32 %v634, 1.442695
        %v650 = vpow.pop %v649
        %v651 = vsel %vm601, %v636, 0.0
        %652 = vadd.xlane.f32.xlu0 %v651
        %v653 = vpop.xlane.xlu0 %652
        %v654 = vsel %vm605, %v638, 0.0
        %655 = vadd.xlane.f32.xlu0 %v654
        %v656 = vpop.xlane.xlu0 %655
        %v657 = vsel %vm601, %v640, 0.0
        %658 = vadd.xlane.f32.xlu0 %v657
        %v659 = vpop.xlane.xlu0 %658
        %v660 = vsel %vm605, %v642, 0.0
        %661 = vadd.xlane.f32.xlu0 %v660
        %v662 = vpop.xlane.xlu0 %661
        %v663 = vsel %vm601, %v644, 0.0
        %664 = vadd.xlane.f32.xlu0 %v663
        %v665 = vpop.xlane.xlu0 %664
        %v666 = vsel %vm605, %v646, 0.0
        %667 = vadd.xlane.f32.xlu0 %v666
        %v668 = vpop.xlane.xlu0 %667
        %v669 = vsel %vm601, %v648, 0.0
        %670 = vadd.xlane.f32.xlu0 %v669
        %v671 = vpop.xlane.xlu0 %670
        %v672 = vsel %vm605, %v650, 0.0
        %673 = vadd.xlane.f32.xlu0 %v672
        %v674 = vpop.xlane.xlu0 %673
        %v675 = vrcp.pop %v653
        %v676 = vrcp.pop %v656
        %v677 = vrcp.pop %v659
        %v678 = vrcp.pop %v662
        %v679 = vrcp.pop %v665
        %v680 = vrcp.pop %v668
        %v681 = vrcp.pop %v671
        %v682 = vrcp.pop %v674
        %v683 = vmul.f32 %v636, %v675
        %v684 = vmul.f32 %v638, %v676
        %v685 = vmul.f32 %v640, %v677
        %v686 = vmul.f32 %v642, %v678
        %v687 = vmul.f32 %v644, %v679
        %v688 = vmul.f32 %v646, %v680
        %v689 = vmul.f32 %v648, %v681
        %v690 = vmul.f32 %v650, %v682
        %v691 = vpack.c.bf16 %v684, %v683
        %v692 = vpack.c.bf16 %v686, %v685
        %v693 = vpack.c.bf16 %v688, %v687
        %v694 = vpack.c.bf16 %v690, %v689
        %695 = vrot.lane.b32.xlu0 %v388, 64
        %v696 = vpop.permute.xlu0 %695
        %v698 = vsel %vm601, %v691, 0
        %vm700 = vcmask 1043456
        %vm701 = vcmask 1044480
        %v702 = vsel %vm700, 4294967295, 65535
        %v703 = vsel %vm701, %v702, 0
        %v705 = vand.u32 %v696, %v703
        %707 = vmatprep.subr.bf16.mxu0 0
        %708 = vmatpush1.bf16.msra.mxu0 %v705
        %709 = vmatprep.subr.bf16.mxu0 0
        %710 = vmatpush1.bf16.msra.mxu0 0
        %711 = vmatprep.subr.bf16.mxu0 0
        %712 = vmatpush1.bf16.msra.mxu0 0
        %713 = vmatprep.subr.bf16.mxu0 0
        %714 = vmatpush1.bf16.msra.mxu0 0
        %715 = vmatprep.subr.bf16.mxu0 0
        %716 = vmatpush1.bf16.msra.mxu0 0
        %717 = vmatprep.subr.bf16.mxu0 0
        %718 = vmatpush1.bf16.msra.mxu0 0
        %719 = vmatprep.subr.bf16.mxu0 0
        %720 = vmatpush1.bf16.msra.mxu0 0
        %721 = vmatprep.subr.bf16.mxu0 0
        %722 = vmatpush1.bf16.msra.mxu0 0
        %723 = vmatprep.subr.bf16.mxu0 0
        %724 = vmatpush1.bf16.msra.mxu0 0
        %725 = vmatprep.subr.bf16.mxu0 0
        %726 = vmatpush1.bf16.msra.mxu0 0
        %727 = vmatprep.subr.bf16.mxu0 0
        %728 = vmatpush1.bf16.msra.mxu0 0
        %729 = vmatprep.subr.bf16.mxu0 0
        %730 = vmatpush1.bf16.msra.mxu0 0
        %731 = vmatprep.subr.bf16.mxu0 0
        %732 = vmatpush1.bf16.msra.mxu0 0
        %733 = vmatprep.subr.bf16.mxu0 0
        %734 = vmatpush1.bf16.msra.mxu0 0
        %735 = vmatprep.subr.bf16.mxu0 0
        %736 = vmatpush1.bf16.msra.mxu0 0
        %737 = vmatprep.subr.bf16.mxu0 0
        %738 = vmatpush1.bf16.msra.mxu0 0
        %739 = vmatprep.mubr.bf16.mxu0 0
        %740 = vmatmul.mubr.bf16.gmra.mrb[0].mxu0 %v698
        %v741 = vpop.f32.mrb[0].mxu0
        %v742 = vadd.f32 0.0, %v741
        %v743 = vpop.f32.mrb[0].mxu0
        %v744 = vpop.f32.mrb[0].mxu0
        %v745 = vadd.f32 0.0, %v744
        %v746 = vpop.f32.mrb[0].mxu0
        %747 = vdwg.mxu0
        %748 = vrot.lane.b32.xlu0 %v389, 64
        %v749 = vpop.permute.xlu0 %748
        %v751 = vsel %vm601, %v692, 0
        %v754 = vand.u32 %v749, %v703
        %756 = vmatprep.subr.bf16.mxu0 0
        %757 = vmatpush1.bf16.msra.mxu0 %v754
        %758 = vmatprep.subr.bf16.mxu0 0
        %759 = vmatpush1.bf16.msra.mxu0 0
        %760 = vmatprep.subr.bf16.mxu0 0
        %761 = vmatpush1.bf16.msra.mxu0 0
        %762 = vmatprep.subr.bf16.mxu0 0
        %763 = vmatpush1.bf16.msra.mxu0 0
        %764 = vmatprep.subr.bf16.mxu0 0
        %765 = vmatpush1.bf16.msra.mxu0 0
        %766 = vmatprep.subr.bf16.mxu0 0
        %767 = vmatpush1.bf16.msra.mxu0 0
        %768 = vmatprep.subr.bf16.mxu0 0
        %769 = vmatpush1.bf16.msra.mxu0 0
        %770 = vmatprep.subr.bf16.mxu0 0
        %771 = vmatpush1.bf16.msra.mxu0 0
        %772 = vmatprep.subr.bf16.mxu0 0
        %773 = vmatpush1.bf16.msra.mxu0 0
        %774 = vmatprep.subr.bf16.mxu0 0
        %775 = vmatpush1.bf16.msra.mxu0 0
        %776 = vmatprep.subr.bf16.mxu0 0
        %777 = vmatpush1.bf16.msra.mxu0 0
        %778 = vmatprep.subr.bf16.mxu0 0
        %779 = vmatpush1.bf16.msra.mxu0 0
        %780 = vmatprep.subr.bf16.mxu0 0
        %781 = vmatpush1.bf16.msra.mxu0 0
        %782 = vmatprep.subr.bf16.mxu0 0
        %783 = vmatpush1.bf16.msra.mxu0 0
        %784 = vmatprep.subr.bf16.mxu0 0
        %785 = vmatpush1.bf16.msra.mxu0 0
        %786 = vmatprep.subr.bf16.mxu0 0
        %787 = vmatpush1.bf16.msra.mxu0 0
        %788 = vmatprep.mubr.bf16.mxu0 0
        %789 = vmatmul.mubr.bf16.gmra.mrb[0].mxu0 %v751
        %v790 = vpop.f32.mrb[0].mxu0
        %v791 = vadd.f32 0.0, %v790
        %v792 = vpop.f32.mrb[0].mxu0
        %v793 = vpop.f32.mrb[0].mxu0
        %v794 = vadd.f32 0.0, %v793
        %v795 = vpop.f32.mrb[0].mxu0
        %796 = vdwg.mxu0
        %797 = vrot.lane.b32.xlu0 %v390, 64
        %v798 = vpop.permute.xlu0 %797
        %v800 = vsel %vm601, %v693, 0
        %v803 = vand.u32 %v798, %v703
        %805 = vmatprep.subr.bf16.mxu0 0
        %806 = vmatpush1.bf16.msra.mxu0 %v803
        %807 = vmatprep.subr.bf16.mxu0 0
        %808 = vmatpush1.bf16.msra.mxu0 0
        %809 = vmatprep.subr.bf16.mxu0 0
        %810 = vmatpush1.bf16.msra.mxu0 0
        %811 = vmatprep.subr.bf16.mxu0 0
        %812 = vmatpush1.bf16.msra.mxu0 0
        %813 = vmatprep.subr.bf16.mxu0 0
        %814 = vmatpush1.bf16.msra.mxu0 0
        %815 = vmatprep.subr.bf16.mxu0 0
        %816 = vmatpush1.bf16.msra.mxu0 0
        %817 = vmatprep.subr.bf16.mxu0 0
        %818 = vmatpush1.bf16.msra.mxu0 0
        %819 = vmatprep.subr.bf16.mxu0 0
        %820 = vmatpush1.bf16.msra.mxu0 0
        %821 = vmatprep.subr.bf16.mxu0 0
        %822 = vmatpush1.bf16.msra.mxu0 0
        %823 = vmatprep.subr.bf16.mxu0 0
        %824 = vmatpush1.bf16.msra.mxu0 0
        %825 = vmatprep.subr.bf16.mxu0 0
        %826 = vmatpush1.bf16.msra.mxu0 0
        %827 = vmatprep.subr.bf16.mxu0 0
        %828 = vmatpush1.bf16.msra.mxu0 0
        %829 = vmatprep.subr.bf16.mxu0 0
        %830 = vmatpush1.bf16.msra.mxu0 0
        %831 = vmatprep.subr.bf16.mxu0 0
        %832 = vmatpush1.bf16.msra.mxu0 0
        %833 = vmatprep.subr.bf16.mxu0 0
        %834 = vmatpush1.bf16.msra.mxu0 0
        %835 = vmatprep.subr.bf16.mxu0 0
        %836 = vmatpush1.bf16.msra.mxu0 0
        %837 = vmatprep.mubr.bf16.mxu0 0
        %838 = vmatmul.mubr.bf16.gmra.mrb[0].mxu0 %v800
        %v839 = vpop.f32.mrb[0].mxu0
        %v840 = vadd.f32 0.0, %v839
        %v841 = vpop.f32.mrb[0].mxu0
        %v842 = vpop.f32.mrb[0].mxu0
        %v843 = vadd.f32 0.0, %v842
        %v844 = vpop.f32.mrb[0].mxu0
        %845 = vdwg.mxu0
        %846 = vrot.lane.b32.xlu0 %v391, 64
        %v847 = vpop.permute.xlu0 %846
        %v849 = vsel %vm601, %v694, 0
        %v852 = vand.u32 %v847, %v703
        %854 = vmatprep.subr.bf16.mxu0 0
        %855 = vmatpush1.bf16.msra.mxu0 %v852
        %856 = vmatprep.subr.bf16.mxu0 0
        %857 = vmatpush1.bf16.msra.mxu0 0
        %858 = vmatprep.subr.bf16.mxu0 0
        %859 = vmatpush1.bf16.msra.mxu0 0
        %860 = vmatprep.subr.bf16.mxu0 0
        %861 = vmatpush1.bf16.msra.mxu0 0
        %862 = vmatprep.subr.bf16.mxu0 0
        %863 = vmatpush1.bf16.msra.mxu0 0
        %864 = vmatprep.subr.bf16.mxu0 0
        %865 = vmatpush1.bf16.msra.mxu0 0
        %866 = vmatprep.subr.bf16.mxu0 0
        %867 = vmatpush1.bf16.msra.mxu0 0
        %868 = vmatprep.subr.bf16.mxu0 0
        %869 = vmatpush1.bf16.msra.mxu0 0
        %870 = vmatprep.subr.bf16.mxu0 0
        %871 = vmatpush1.bf16.msra.mxu0 0
        %872 = vmatprep.subr.bf16.mxu0 0
        %873 = vmatpush1.bf16.msra.mxu0 0
        %874 = vmatprep.subr.bf16.mxu0 0
        %875 = vmatpush1.bf16.msra.mxu0 0
        %876 = vmatprep.subr.bf16.mxu0 0
        %877 = vmatpush1.bf16.msra.mxu0 0
        %878 = vmatprep.subr.bf16.mxu0 0
        %879 = vmatpush1.bf16.msra.mxu0 0
        %880 = vmatprep.subr.bf16.mxu0 0
        %881 = vmatpush1.bf16.msra.mxu0 0
        %882 = vmatprep.subr.bf16.mxu0 0
        %883 = vmatpush1.bf16.msra.mxu0 0
        %884 = vmatprep.subr.bf16.mxu0 0
        %885 = vmatpush1.bf16.msra.mxu0 0
        %886 = vmatprep.mubr.bf16.mxu0 0
        %887 = vmatmul.mubr.bf16.gmra.mrb[0].mxu0 %v849
        %v888 = vpop.f32.mrb[0].mxu0
        %v889 = vadd.f32 0.0, %v888
        %v890 = vpop.f32.mrb[0].mxu0
        %v891 = vpop.f32.mrb[0].mxu0
        %v892 = vadd.f32 0.0, %v891
        %v893 = vpop.f32.mrb[0].mxu0
        %894 = vdwg.mxu0
        %897 = vrot.lane.b32.xlu0 %v791, 8
        %v898 = vpop.permute.xlu0 %897
        %899 = vrot.lane.b32.xlu0 %v794, 8
        %v900 = vpop.permute.xlu0 %899
        %905 = vrot.lane.b32.xlu0 %v840, 16
        %v906 = vpop.permute.xlu0 %905
        %907 = vrot.lane.b32.xlu0 %v843, 16
        %v908 = vpop.permute.xlu0 %907
        %913 = vrot.lane.b32.xlu0 %v889, 24
        %v914 = vpop.permute.xlu0 %913
        %915 = vrot.lane.b32.xlu0 %v892, 24
        %v916 = vpop.permute.xlu0 %915
        %v919 = vsel %vm395, %v742, %v898
        %v920 = vsel %vm395, %v745, %v900
        %vm921 = vcmask 130048
        %v922 = vsel %vm921, %v919, %v906
        %v923 = vsel %vm921, %v920, %v908
        %vm924 = vcmask 195584
        %v925 = vsel %vm924, %v922, %v914
        %v926 = vsel %vm924, %v923, %v916
        %v927 = vpack.c.bf16 %v926, %v925
        %v928 = vlaneseq
        %v929 = vshrl.u32 %v928, 7
        %v930 = vsub.s32 1, %v929
        %v931 = vrot.slane %v306, %v930
        %v936 = vunpack.c.l.b16 %v290
        %v937 = vunpack.c.l.b16 %v291
        %v938 = vunpack.c.l.b16 %v292
        %v939 = vunpack.c.l.b16 %v293
        %v940 = vpack.c.b16 %v937, %v936
        %v941 = vpack.c.b16 %v939, %v938
        %v945 = vsel %vm271, %v927, 0
        %947 = vmatprep.subr.bf16.mxu0 0
        %948 = vmatpush1.bf16.msra.mxu0 %v940
        %949 = vmatprep.subr.bf16.mxu0 0
        %950 = vmatpush1.bf16.msra.mxu0 %v941
        %951 = vmatprep.subr.bf16.mxu0 0
        %952 = vmatpush1.bf16.msra.mxu0 0
        %953 = vmatprep.subr.bf16.mxu0 0
        %954 = vmatpush1.bf16.msra.mxu0 0
        %955 = vmatprep.subr.bf16.mxu0 0
        %956 = vmatpush1.bf16.msra.mxu0 0
        %957 = vmatprep.subr.bf16.mxu0 0
        %958 = vmatpush1.bf16.msra.mxu0 0
        %959 = vmatprep.subr.bf16.mxu0 0
        %960 = vmatpush1.bf16.msra.mxu0 0
        %961 = vmatprep.subr.bf16.mxu0 0
        %962 = vmatpush1.bf16.msra.mxu0 0
        %963 = vmatprep.subr.bf16.mxu0 0
        %964 = vmatpush1.bf16.msra.mxu0 0
        %965 = vmatprep.subr.bf16.mxu0 0
        %966 = vmatpush1.bf16.msra.mxu0 0
        %967 = vmatprep.subr.bf16.mxu0 0
        %968 = vmatpush1.bf16.msra.mxu0 0
        %969 = vmatprep.subr.bf16.mxu0 0
        %970 = vmatpush1.bf16.msra.mxu0 0
        %971 = vmatprep.subr.bf16.mxu0 0
        %972 = vmatpush1.bf16.msra.mxu0 0
        %973 = vmatprep.subr.bf16.mxu0 0
        %974 = vmatpush1.bf16.msra.mxu0 0
        %975 = vmatprep.subr.bf16.mxu0 0
        %976 = vmatpush1.bf16.msra.mxu0 0
        %977 = vmatprep.subr.bf16.mxu0 0
        %978 = vmatpush1.bf16.msra.mxu0 0
        %979 = vmatprep.mubr.bf16.mxu0 0
        %980 = vmatmul.mubr.bf16.gmra.mrb[0].mxu0 %v945
        %v981 = vpop.f32.mrb[0].mxu0
        %v982 = vadd.f32 %v931, %v981
        %v983 = vpop.f32.mrb[0].mxu0
        %v984 = vpop.f32.mrb[0].mxu0
        %v985 = vadd.f32 %v931, %v984
        %v986 = vpop.f32.mrb[0].mxu0
        %987 = vdwg.mxu0
        %v988 = vadd.f32 %v284, %v982
        %v989 = vadd.f32 %v285, %v985
        %v990 = vsel %vm271, %v988, 0.0
        %991 = vadd.xlane.f32.xlu0 %v990
        %v992 = vpop.xlane.xlu0 %991
        %v993 = vsel %vm281, %v989, 0.0
        %994 = vadd.xlane.f32.xlu0 %v993
        %v995 = vpop.xlane.xlu0 %994
        %v996 = vrcp.pop 32.0
        %v997 = vmul.f32 %v992, %v996
        %v998 = vmul.f32 %v995, %v996
        %v999 = vsub.f32 %v988, %v997
        %v1000 = vsub.f32 %v989, %v998
        %v1001 = vmul.f32 %v999, %v999
        %v1002 = vmul.f32 %v1000, %v1000
        %v1003 = vsel %vm271, %v1001, 0.0
        %1004 = vadd.xlane.f32.xlu0 %v1003
        %v1005 = vpop.xlane.xlu0 %1004
        %v1006 = vsel %vm281, %v1002, 0.0
        %1007 = vadd.xlane.f32.xlu0 %v1006
        %v1008 = vpop.xlane.xlu0 %1007
        %v1009 = vmul.f32 %v1005, %v996
        %v1010 = vmul.f32 %v1008, %v996
        %v1011 = vadd.f32 %v1009, 1e-05
        %v1012 = vadd.f32 %v1010, 1e-05
        %v1013 = vrsqrt.pop %v1011
        %v1014 = vrsqrt.pop %v1012
        %v1015 = vmul.f32 %v999, %v1013
        %v1016 = vmul.f32 %v1000, %v1014
        %v1017 = vlaneseq
        %v1018 = vshrl.u32 %v1017, 7
        %v1019 = vsub.s32 2, %v1018
        %v1020 = vrot.slane %v306, %v1019
        %v1021 = vmul.f32 %v1015, %v1020
        %v1022 = vmul.f32 %v1016, %v1020
        %v1023 = vlaneseq
        %v1024 = vshrl.u32 %v1023, 7
        %v1025 = vsub.s32 3, %v1024
        %v1026 = vrot.slane %v306, %v1025
        %v1027 = vadd.f32 %v1021, %v1026
        %v1028 = vadd.f32 %v1022, %v1026
        %v1029 = vpack.c.bf16 %v1028, %v1027
        %v1030 = vlaneseq
        %v1031 = vshrl.u32 %v1030, 7
        %v1032 = vsub.s32 6, %v1031
        %v1033 = vrot.slane %v306, %v1032
        %v1038 = vunpack.c.l.b16 %v294
        %v1039 = vunpack.c.l.b16 %v295
        %v1040 = vunpack.c.l.b16 %v296
        %v1041 = vunpack.c.l.b16 %v297
        %v1042 = vpack.c.b16 %v1039, %v1038
        %v1043 = vpack.c.b16 %v1041, %v1040
        %v1047 = vsel %vm271, %v1029, 0
        %1049 = vmatprep.subr.bf16.mxu0 0
        %1050 = vmatpush1.bf16.msra.mxu0 %v1042
        %1051 = vmatprep.subr.bf16.mxu0 0
        %1052 = vmatpush1.bf16.msra.mxu0 %v1043
        %1053 = vmatprep.subr.bf16.mxu0 0
        %1054 = vmatpush1.bf16.msra.mxu0 0
        %1055 = vmatprep.subr.bf16.mxu0 0
        %1056 = vmatpush1.bf16.msra.mxu0 0
        %1057 = vmatprep.subr.bf16.mxu0 0
        %1058 = vmatpush1.bf16.msra.mxu0 0
        %1059 = vmatprep.subr.bf16.mxu0 0
        %1060 = vmatpush1.bf16.msra.mxu0 0
        %1061 = vmatprep.subr.bf16.mxu0 0
        %1062 = vmatpush1.bf16.msra.mxu0 0
        %1063 = vmatprep.subr.bf16.mxu0 0
        %1064 = vmatpush1.bf16.msra.mxu0 0
        %1065 = vmatprep.subr.bf16.mxu0 0
        %1066 = vmatpush1.bf16.msra.mxu0 0
        %1067 = vmatprep.subr.bf16.mxu0 0
        %1068 = vmatpush1.bf16.msra.mxu0 0
        %1069 = vmatprep.subr.bf16.mxu0 0
        %1070 = vmatpush1.bf16.msra.mxu0 0
        %1071 = vmatprep.subr.bf16.mxu0 0
        %1072 = vmatpush1.bf16.msra.mxu0 0
        %1073 = vmatprep.subr.bf16.mxu0 0
        %1074 = vmatpush1.bf16.msra.mxu0 0
        %1075 = vmatprep.subr.bf16.mxu0 0
        %1076 = vmatpush1.bf16.msra.mxu0 0
        %1077 = vmatprep.subr.bf16.mxu0 0
        %1078 = vmatpush1.bf16.msra.mxu0 0
        %1079 = vmatprep.subr.bf16.mxu0 0
        %1080 = vmatpush1.bf16.msra.mxu0 0
        %1081 = vmatprep.mubr.bf16.mxu0 0
        %1082 = vmatmul.mubr.bf16.gmra.mrb[0].mxu0 %v1047
        %v1083 = vpop.f32.mrb[0].mxu0
        %v1084 = vadd.f32 %v1033, %v1083
        %v1085 = vpop.f32.mrb[0].mxu0
        %v1086 = vpop.f32.mrb[0].mxu0
        %v1087 = vadd.f32 %v1033, %v1086
        %v1088 = vpop.f32.mrb[0].mxu0
        %1089 = vdwg.mxu0
        %v1090 = vmul.f32 %v1084, 0.5
        %v1091 = vmul.f32 %v1087, 0.5
        %v1092 = vmul.f32 %v1084, 0.70710677
        %v1093 = vmul.f32 %v1087, 0.70710677
        %vm1094 = vcmp.ge.f32.partialorder %v1092, 0.0
        %vm1095 = vcmp.ge.f32.partialorder %v1093, 0.0
        %v1096 = vsel %vm1094, 1.0, -1.0
        %v1097 = vsel %vm1095, 1.0, -1.0
        %v1098 = vand.u32 2147483647, %v1092
        %v1099 = vand.u32 2147483647, %v1093
        %v1100 = vmul.f32 %v1098, 0.3275911
        %v1101 = vmul.f32 %v1099, 0.3275911
        %v1102 = vadd.f32 %v1100, 1.0
        %v1103 = vadd.f32 %v1101, 1.0
        %v1104 = vrcp.pop %v1102
        %v1105 = vmul.f32 1.0, %v1104
        %v1106 = vrcp.pop %v1103
        %v1107 = vmul.f32 1.0, %v1106
        %v1108 = vmul.f32 %v1105, 1.0614054
        %v1109 = vmul.f32 %v1107, 1.0614054
        %v1110 = vadd.f32 %v1108, -1.4531521
        %v1111 = vadd.f32 %v1109, -1.4531521
        %v1112 = vmul.f32 %v1110, %v1105
        %v1113 = vmul.f32 %v1111, %v1107
        %v1114 = vadd.f32 %v1112, 1.4214138
        %v1115 = vadd.f32 %v1113, 1.4214138
        %v1116 = vmul.f32 %v1114, %v1105
        %v1117 = vmul.f32 %v1115, %v1107
        %v1118 = vadd.f32 %v1116, -0.28449672
        %v1119 = vadd.f32 %v1117, -0.28449672
        %v1120 = vmul.f32 %v1118, %v1105
        %v1121 = vmul.f32 %v1119, %v1107
        %v1122 = vadd.f32 %v1120, 0.2548296
        %v1123 = vadd.f32 %v1121, 0.2548296
        %v1124 = vmul.f32 %v1122, %v1105
        %v1125 = vmul.f32 %v1123, %v1107
        %v1126 = vsub.f32 0.0, %v1098
        %v1127 = vsub.f32 0.0, %v1099
        %v1128 = vmul.f32 %v1126, %v1098
        %v1129 = vmul.f32 %v1127, %v1099
        %v1130 = vmul.f32 %v1128, 1.442695
        %v1131 = vpow.pop %v1130
        %v1132 = vmul.f32 %v1129, 1.442695
        %v1133 = vpow.pop %v1132
        %v1134 = vmul.f32 %v1124, %v1131
        %v1135 = vmul.f32 %v1125, %v1133
        %v1136 = vsub.f32 1.0, %v1134
        %v1137 = vsub.f32 1.0, %v1135
        %v1138 = vmul.f32 %v1096, %v1136
        %v1139 = vmul.f32 %v1097, %v1137
        %v1140 = vadd.f32 %v1138, 1.0
        %v1141 = vadd.f32 %v1139, 1.0
        %v1142 = vmul.f32 %v1090, %v1140
        %v1143 = vmul.f32 %v1091, %v1141
        %v1144 = vpack.c.bf16 %v1143, %v1142
        %v1145 = vlaneseq
        %v1146 = vshrl.u32 %v1145, 7
        %v1147 = vsub.s32 7, %v1146
        %v1148 = vrot.slane %v306, %v1147
        %v1157 = vunpack.c.l.b16 %v298
        %v1158 = vunpack.c.l.b16 %v299
        %v1159 = vunpack.c.l.b16 %v300
        %v1160 = vunpack.c.l.b16 %v301
        %v1161 = vunpack.c.l.b16 %v302
        %v1162 = vunpack.c.l.b16 %v303
        %v1163 = vunpack.c.l.b16 %v304
        %v1164 = vunpack.c.l.b16 %v305
        %v1165 = vpack.c.b16 %v1158, %v1157
        %v1166 = vpack.c.b16 %v1160, %v1159
        %v1167 = vpack.c.b16 %v1162, %v1161
        %v1168 = vpack.c.b16 %v1164, %v1163
        %vm1173 = vcmask 523264
        %v1175 = vsel %vm1173, %v1144, 0
        %1177 = vmatprep.subr.bf16.mxu0 0
        %1178 = vmatpush1.bf16.msra.mxu0 %v1165
        %1179 = vmatprep.subr.bf16.mxu0 0
        %1180 = vmatpush1.bf16.msra.mxu0 %v1166
        %1181 = vmatprep.subr.bf16.mxu0 0
        %1182 = vmatpush1.bf16.msra.mxu0 %v1167
        %1183 = vmatprep.subr.bf16.mxu0 0
        %1184 = vmatpush1.bf16.msra.mxu0 %v1168
        %1185 = vmatprep.subr.bf16.mxu0 0
        %1186 = vmatpush1.bf16.msra.mxu0 0
        %1187 = vmatprep.subr.bf16.mxu0 0
        %1188 = vmatpush1.bf16.msra.mxu0 0
        %1189 = vmatprep.subr.bf16.mxu0 0
        %1190 = vmatpush1.bf16.msra.mxu0 0
        %1191 = vmatprep.subr.bf16.mxu0 0
        %1192 = vmatpush1.bf16.msra.mxu0 0
        %1193 = vmatprep.subr.bf16.mxu0 0
        %1194 = vmatpush1.bf16.msra.mxu0 0
        %1195 = vmatprep.subr.bf16.mxu0 0
        %1196 = vmatpush1.bf16.msra.mxu0 0
        %1197 = vmatprep.subr.bf16.mxu0 0
        %1198 = vmatpush1.bf16.msra.mxu0 0
        %1199 = vmatprep.subr.bf16.mxu0 0
        %1200 = vmatpush1.bf16.msra.mxu0 0
        %1201 = vmatprep.subr.bf16.mxu0 0
        %1202 = vmatpush1.bf16.msra.mxu0 0
        %1203 = vmatprep.subr.bf16.mxu0 0
        %1204 = vmatpush1.bf16.msra.mxu0 0
        %1205 = vmatprep.subr.bf16.mxu0 0
        %1206 = vmatpush1.bf16.msra.mxu0 0
        %1207 = vmatprep.subr.bf16.mxu0 0
        %1208 = vmatpush1.bf16.msra.mxu0 0
        %1209 = vmatprep.mubr.bf16.mxu0 0
        %1210 = vmatmul.mubr.bf16.gmra.mrb[0].mxu0 %v1175
        %v1211 = vpop.f32.mrb[0].mxu0
        %v1212 = vadd.f32 %v1148, %v1211
        %v1213 = vpop.f32.mrb[0].mxu0
        %v1214 = vpop.f32.mrb[0].mxu0
        %v1215 = vadd.f32 %v1148, %v1214
        %v1216 = vpop.f32.mrb[0].mxu0
        %1217 = vdwg.mxu0
        %v1218 = vadd.f32 %v1027, %v1212
        %v1219 = vadd.f32 %v1028, %v1215
        %v1220 = vsel %vm271, %v1218, 0.0
        %1221 = vadd.xlane.f32.xlu0 %v1220
        %v1222 = vpop.xlane.xlu0 %1221
        %v1223 = vsel %vm281, %v1219, 0.0
        %1224 = vadd.xlane.f32.xlu0 %v1223
        %v1225 = vpop.xlane.xlu0 %1224
        %v1226 = vmul.f32 %v1222, %v996
        %v1227 = vmul.f32 %v1225, %v996
        %v1228 = vsub.f32 %v1218, %v1226
        %v1229 = vsub.f32 %v1219, %v1227
        %v1230 = vmul.f32 %v1228, %v1228
        %v1231 = vmul.f32 %v1229, %v1229
        %v1232 = vsel %vm271, %v1230, 0.0
        %1233 = vadd.xlane.f32.xlu0 %v1232
        %v1234 = vpop.xlane.xlu0 %1233
        %v1235 = vsel %vm281, %v1231, 0.0
        %1236 = vadd.xlane.f32.xlu0 %v1235
        %v1237 = vpop.xlane.xlu0 %1236
        %v1238 = vmul.f32 %v1234, %v996
        %v1239 = vmul.f32 %v1237, %v996
        %v1240 = vadd.f32 %v1238, 1e-05
        %v1241 = vadd.f32 %v1239, 1e-05
        %v1242 = vrsqrt.pop %v1240
        %v1243 = vrsqrt.pop %v1241
        %v1244 = vmul.f32 %v1228, %v1242
        %v1245 = vmul.f32 %v1229, %v1243
        %v1246 = vlaneseq
        %v1247 = vshrl.u32 %v1246, 7
        %v1248 = vsub.s32 4, %v1247
        %v1249 = vrot.slane %v306, %v1248
        %v1250 = vmul.f32 %v1244, %v1249
        %v1251 = vmul.f32 %v1245, %v1249
        %v1252 = vlaneseq
        %v1253 = vshrl.u32 %v1252, 7
        %v1254 = vsub.s32 5, %v1253
        %v1255 = vrot.slane %v306, %v1254
        %v1256 = vadd.f32 %v1250, %v1255
        %v1257 = vadd.f32 %v1251, %v1255
        %s1258 = scalar_lea.vmem %s1, 16
        %v1259 = vld [vmem:[%s1258] sm:$0xf]
        %v1260 = vld [vmem:[%s1258 + $0x4] sm:$0xf]
        %v1261 = vld [vmem:[%s1258 + $0x8] sm:$0xf]
        %v1262 = vld [vmem:[%s1258 + $0xc] sm:$0xf]
        %s1263 = scalar_lea.vmem %s2, 16
        %v1264 = vld [vmem:[%s1263] sm:$0xf]
        %v1265 = vld [vmem:[%s1263 + $0x4] sm:$0xf]
        %v1266 = vld [vmem:[%s1263 + $0x8] sm:$0xf]
        %v1267 = vld [vmem:[%s1263 + $0xc] sm:$0xf]
        %s1268 = scalar_lea.vmem %s3, 16
        %v1269 = vld [vmem:[%s1268] sm:$0xf]
        %v1270 = vld [vmem:[%s1268 + $0x4] sm:$0xf]
        %v1271 = vld [vmem:[%s1268 + $0x8] sm:$0xf]
        %v1272 = vld [vmem:[%s1268 + $0xc] sm:$0xf]
        %s1273 = scalar_lea.vmem %s4, 32
        %v1274 = vld [vmem:[%s1273] sm:$0xf]
        %v1275 = vld [vmem:[%s1273 + $0x4] sm:$0xf]
        %v1276 = vld [vmem:[%s1273 + $0x8] sm:$0xf]
        %v1277 = vld [vmem:[%s1273 + $0xc] sm:$0xf]
        %v1278 = vld [vmem:[%s1273 + $0x10] sm:$0xf]
        %v1279 = vld [vmem:[%s1273 + $0x14] sm:$0xf]
        %v1280 = vld [vmem:[%s1273 + $0x18] sm:$0xf]
        %v1281 = vld [vmem:[%s1273 + $0x1c] sm:$0xf]
        %s1282 = scalar_lea.vmem %s5, 8
        %v1283 = vld [vmem:[%s1282] sm:$0xff]
        %v1284 = vpack.c.bf16 %v1257, %v1256
        %v1285 = vlaneseq
        %v1286 = vshrl.u32 %v1285, 7
        %v1287 = vsub.s32 0, %v1286
        %v1288 = vrot.slane %v1283, %v1287
        %v1293 = vunpack.c.l.b16 %v1259
        %v1294 = vunpack.c.l.b16 %v1260
        %v1295 = vunpack.c.l.b16 %v1261
        %v1296 = vunpack.c.l.b16 %v1262
        %v1297 = vpack.c.b16 %v1294, %v1293
        %v1298 = vpack.c.b16 %v1296, %v1295
        %v1302 = vsel %vm271, %v1284, 0
        %1304 = vmatprep.subr.bf16.mxu0 0
        %1305 = vmatpush1.bf16.msra.mxu0 %v1297
        %1306 = vmatprep.subr.bf16.mxu0 0
        %1307 = vmatpush1.bf16.msra.mxu0 %v1298
        %1308 = vmatprep.subr.bf16.mxu0 0
        %1309 = vmatpush1.bf16.msra.mxu0 0
        %1310 = vmatprep.subr.bf16.mxu0 0
        %1311 = vmatpush1.bf16.msra.mxu0 0
        %1312 = vmatprep.subr.bf16.mxu0 0
        %1313 = vmatpush1.bf16.msra.mxu0 0
        %1314 = vmatprep.subr.bf16.mxu0 0
        %1315 = vmatpush1.bf16.msra.mxu0 0
        %1316 = vmatprep.subr.bf16.mxu0 0
        %1317 = vmatpush1.bf16.msra.mxu0 0
        %1318 = vmatprep.subr.bf16.mxu0 0
        %1319 = vmatpush1.bf16.msra.mxu0 0
        %1320 = vmatprep.subr.bf16.mxu0 0
        %1321 = vmatpush1.bf16.msra.mxu0 0
        %1322 = vmatprep.subr.bf16.mxu0 0
        %1323 = vmatpush1.bf16.msra.mxu0 0
        %1324 = vmatprep.subr.bf16.mxu0 0
        %1325 = vmatpush1.bf16.msra.mxu0 0
        %1326 = vmatprep.subr.bf16.mxu0 0
        %1327 = vmatpush1.bf16.msra.mxu0 0
        %1328 = vmatprep.subr.bf16.mxu0 0
        %1329 = vmatpush1.bf16.msra.mxu0 0
        %1330 = vmatprep.subr.bf16.mxu0 0
        %1331 = vmatpush1.bf16.msra.mxu0 0
        %1332 = vmatprep.subr.bf16.mxu0 0
        %1333 = vmatpush1.bf16.msra.mxu0 0
        %1334 = vmatprep.subr.bf16.mxu0 0
        %1335 = vmatpush1.bf16.msra.mxu0 0
        %1336 = vmatprep.mubr.bf16.mxu0 0
        %1337 = vmatmul.mubr.bf16.gmra.mrb[0].mxu0 %v1302
        %v1338 = vpop.f32.mrb[0].mxu0
        %v1339 = vadd.f32 %v1288, %v1338
        %v1340 = vpop.f32.mrb[0].mxu0
        %v1341 = vpop.f32.mrb[0].mxu0
        %v1342 = vadd.f32 %v1288, %v1341
        %v1343 = vpop.f32.mrb[0].mxu0
        %1344 = vdwg.mxu0
        %1347 = vrot.lane.b32.xlu0 %v1339, 120
        %v1348 = vpop.permute.xlu0 %1347
        %1349 = vrot.lane.b32.xlu0 %v1342, 120
        %v1350 = vpop.permute.xlu0 %1349
        %1353 = vrot.lane.b32.xlu0 %v1339, 112
        %v1354 = vpop.permute.xlu0 %1353
        %1355 = vrot.lane.b32.xlu0 %v1342, 112
        %v1356 = vpop.permute.xlu0 %1355
        %1359 = vrot.lane.b32.xlu0 %v1339, 104
        %v1360 = vpop.permute.xlu0 %1359
        %1361 = vrot.lane.b32.xlu0 %v1342, 104
        %v1362 = vpop.permute.xlu0 %1361
        %v1365 = vpack.c.bf16 %v1342, %v1339
        %v1366 = vpack.c.bf16 %v1350, %v1348
        %v1367 = vpack.c.bf16 %v1356, %v1354
        %v1368 = vpack.c.bf16 %v1362, %v1360
        %1370 = vrot.lane.b32.xlu0 %v1365, 96
        %v1371 = vpop.permute.xlu0 %1370
        %v1373 = vsel %vm395, %v1365, 0
        %v1376 = vsel %vm395, %v1371, 0
        %1378 = vmatprep.subr.bf16.mxu0 0
        %1379 = vmatpush1.bf16.xpose.msra.mxu0 %v1376
        %1380 = vmatprep.subr.bf16.mxu0 0
        %1381 = vmatpush1.bf16.xpose.msra.mxu0 0
        %1382 = vmatprep.subr.bf16.mxu0 0
        %1383 = vmatpush1.bf16.xpose.msra.mxu0 0
        %1384 = vmatprep.subr.bf16.mxu0 0
        %1385 = vmatpush1.bf16.xpose.msra.mxu0 0
        %1386 = vmatprep.subr.bf16.mxu0 0
        %1387 = vmatpush1.bf16.xpose.msra.mxu0 0
        %1388 = vmatprep.subr.bf16.mxu0 0
        %1389 = vmatpush1.bf16.xpose.msra.mxu0 0
        %1390 = vmatprep.subr.bf16.mxu0 0
        %1391 = vmatpush1.bf16.xpose.msra.mxu0 0
        %1392 = vmatprep.subr.bf16.mxu0 0
        %1393 = vmatpush1.bf16.xpose.msra.mxu0 0
        %1394 = vmatprep.subr.bf16.mxu0 0
        %1395 = vmatpush1.bf16.xpose.msra.mxu0 0
        %1396 = vmatprep.subr.bf16.mxu0 0
        %1397 = vmatpush1.bf16.xpose.msra.mxu0 0
        %1398 = vmatprep.subr.bf16.mxu0 0
        %1399 = vmatpush1.bf16.xpose.msra.mxu0 0
        %1400 = vmatprep.subr.bf16.mxu0 0
        %1401 = vmatpush1.bf16.xpose.msra.mxu0 0
        %1402 = vmatprep.subr.bf16.mxu0 0
        %1403 = vmatpush1.bf16.xpose.msra.mxu0 0
        %1404 = vmatprep.subr.bf16.mxu0 0
        %1405 = vmatpush1.bf16.xpose.msra.mxu0 0
        %1406 = vmatprep.subr.bf16.mxu0 0
        %1407 = vmatpush1.bf16.xpose.msra.mxu0 0
        %1408 = vmatprep.subr.bf16.mxu0 0
        %1409 = vmatpush1.bf16.xpose.msra.mxu0 0
        %1410 = vmatprep.mubr.bf16.mxu0 0
        %1411 = vmatmul.mubr.bf16.gmra.mrb[0].mxu0 %v1373
        %v1412 = vpop.f32.mrb[0].mxu0
        %v1413 = vadd.f32 0.0, %v1412
        %v1414 = vpop.f32.mrb[0].mxu0
        %v1415 = vpop.f32.mrb[0].mxu0
        %v1416 = vadd.f32 0.0, %v1415
        %v1417 = vpop.f32.mrb[0].mxu0
        %1418 = vdwg.mxu0
        %1420 = vrot.lane.b32.xlu0 %v1366, 96
        %v1421 = vpop.permute.xlu0 %1420
        %v1423 = vsel %vm395, %v1366, 0
        %v1426 = vsel %vm395, %v1421, 0
        %1428 = vmatprep.subr.bf16.mxu0 0
        %1429 = vmatpush1.bf16.xpose.msra.mxu0 %v1426
        %1430 = vmatprep.subr.bf16.mxu0 0
        %1431 = vmatpush1.bf16.xpose.msra.mxu0 0
        %1432 = vmatprep.subr.bf16.mxu0 0
        %1433 = vmatpush1.bf16.xpose.msra.mxu0 0
        %1434 = vmatprep.subr.bf16.mxu0 0
        %1435 = vmatpush1.bf16.xpose.msra.mxu0 0
        %1436 = vmatprep.subr.bf16.mxu0 0
        %1437 = vmatpush1.bf16.xpose.msra.mxu0 0
        %1438 = vmatprep.subr.bf16.mxu0 0
        %1439 = vmatpush1.bf16.xpose.msra.mxu0 0
        %1440 = vmatprep.subr.bf16.mxu0 0
        %1441 = vmatpush1.bf16.xpose.msra.mxu0 0
        %1442 = vmatprep.subr.bf16.mxu0 0
        %1443 = vmatpush1.bf16.xpose.msra.mxu0 0
        %1444 = vmatprep.subr.bf16.mxu0 0
        %1445 = vmatpush1.bf16.xpose.msra.mxu0 0
        %1446 = vmatprep.subr.bf16.mxu0 0
        %1447 = vmatpush1.bf16.xpose.msra.mxu0 0
        %1448 = vmatprep.subr.bf16.mxu0 0
        %1449 = vmatpush1.bf16.xpose.msra.mxu0 0
        %1450 = vmatprep.subr.bf16.mxu0 0
        %1451 = vmatpush1.bf16.xpose.msra.mxu0 0
        %1452 = vmatprep.subr.bf16.mxu0 0
        %1453 = vmatpush1.bf16.xpose.msra.mxu0 0
        %1454 = vmatprep.subr.bf16.mxu0 0
        %1455 = vmatpush1.bf16.xpose.msra.mxu0 0
        %1456 = vmatprep.subr.bf16.mxu0 0
        %1457 = vmatpush1.bf16.xpose.msra.mxu0 0
        %1458 = vmatprep.subr.bf16.mxu0 0
        %1459 = vmatpush1.bf16.xpose.msra.mxu0 0
        %1460 = vmatprep.mubr.bf16.mxu0 0
        %1461 = vmatmul.mubr.bf16.gmra.mrb[0].mxu0 %v1423
        %v1462 = vpop.f32.mrb[0].mxu0
        %v1463 = vadd.f32 0.0, %v1462
        %v1464 = vpop.f32.mrb[0].mxu0
        %v1465 = vpop.f32.mrb[0].mxu0
        %v1466 = vadd.f32 0.0, %v1465
        %v1467 = vpop.f32.mrb[0].mxu0
        %1468 = vdwg.mxu0
        %1470 = vrot.lane.b32.xlu0 %v1367, 96
        %v1471 = vpop.permute.xlu0 %1470
        %v1473 = vsel %vm395, %v1367, 0
        %v1476 = vsel %vm395, %v1471, 0
        %1478 = vmatprep.subr.bf16.mxu0 0
        %1479 = vmatpush1.bf16.xpose.msra.mxu0 %v1476
        %1480 = vmatprep.subr.bf16.mxu0 0
        %1481 = vmatpush1.bf16.xpose.msra.mxu0 0
        %1482 = vmatprep.subr.bf16.mxu0 0
        %1483 = vmatpush1.bf16.xpose.msra.mxu0 0
        %1484 = vmatprep.subr.bf16.mxu0 0
        %1485 = vmatpush1.bf16.xpose.msra.mxu0 0
        %1486 = vmatprep.subr.bf16.mxu0 0
        %1487 = vmatpush1.bf16.xpose.msra.mxu0 0
        %1488 = vmatprep.subr.bf16.mxu0 0
        %1489 = vmatpush1.bf16.xpose.msra.mxu0 0
        %1490 = vmatprep.subr.bf16.mxu0 0
        %1491 = vmatpush1.bf16.xpose.msra.mxu0 0
        %1492 = vmatprep.subr.bf16.mxu0 0
        %1493 = vmatpush1.bf16.xpose.msra.mxu0 0
        %1494 = vmatprep.subr.bf16.mxu0 0
        %1495 = vmatpush1.bf16.xpose.msra.mxu0 0
        %1496 = vmatprep.subr.bf16.mxu0 0
        %1497 = vmatpush1.bf16.xpose.msra.mxu0 0
        %1498 = vmatprep.subr.bf16.mxu0 0
        %1499 = vmatpush1.bf16.xpose.msra.mxu0 0
        %1500 = vmatprep.subr.bf16.mxu0 0
        %1501 = vmatpush1.bf16.xpose.msra.mxu0 0
        %1502 = vmatprep.subr.bf16.mxu0 0
        %1503 = vmatpush1.bf16.xpose.msra.mxu0 0
        %1504 = vmatprep.subr.bf16.mxu0 0
        %1505 = vmatpush1.bf16.xpose.msra.mxu0 0
        %1506 = vmatprep.subr.bf16.mxu0 0
        %1507 = vmatpush1.bf16.xpose.msra.mxu0 0
        %1508 = vmatprep.subr.bf16.mxu0 0
        %1509 = vmatpush1.bf16.xpose.msra.mxu0 0
        %1510 = vmatprep.mubr.bf16.mxu0 0
        %1511 = vmatmul.mubr.bf16.gmra.mrb[0].mxu0 %v1473
        %v1512 = vpop.f32.mrb[0].mxu0
        %v1513 = vadd.f32 0.0, %v1512
        %v1514 = vpop.f32.mrb[0].mxu0
        %v1515 = vpop.f32.mrb[0].mxu0
        %v1516 = vadd.f32 0.0, %v1515
        %v1517 = vpop.f32.mrb[0].mxu0
        %1518 = vdwg.mxu0
        %1520 = vrot.lane.b32.xlu0 %v1368, 96
        %v1521 = vpop.permute.xlu0 %1520
        %v1523 = vsel %vm395, %v1368, 0
        %v1526 = vsel %vm395, %v1521, 0
        %1528 = vmatprep.subr.bf16.mxu0 0
        %1529 = vmatpush1.bf16.xpose.msra.mxu0 %v1526
        %1530 = vmatprep.subr.bf16.mxu0 0
        %1531 = vmatpush1.bf16.xpose.msra.mxu0 0
        %1532 = vmatprep.subr.bf16.mxu0 0
        %1533 = vmatpush1.bf16.xpose.msra.mxu0 0
        %1534 = vmatprep.subr.bf16.mxu0 0
        %1535 = vmatpush1.bf16.xpose.msra.mxu0 0
        %1536 = vmatprep.subr.bf16.mxu0 0
        %1537 = vmatpush1.bf16.xpose.msra.mxu0 0
        %1538 = vmatprep.subr.bf16.mxu0 0
        %1539 = vmatpush1.bf16.xpose.msra.mxu0 0
        %1540 = vmatprep.subr.bf16.mxu0 0
        %1541 = vmatpush1.bf16.xpose.msra.mxu0 0
        %1542 = vmatprep.subr.bf16.mxu0 0
        %1543 = vmatpush1.bf16.xpose.msra.mxu0 0
        %1544 = vmatprep.subr.bf16.mxu0 0
        %1545 = vmatpush1.bf16.xpose.msra.mxu0 0
        %1546 = vmatprep.subr.bf16.mxu0 0
        %1547 = vmatpush1.bf16.xpose.msra.mxu0 0
        %1548 = vmatprep.subr.bf16.mxu0 0
        %1549 = vmatpush1.bf16.xpose.msra.mxu0 0
        %1550 = vmatprep.subr.bf16.mxu0 0
        %1551 = vmatpush1.bf16.xpose.msra.mxu0 0
        %1552 = vmatprep.subr.bf16.mxu0 0
        %1553 = vmatpush1.bf16.xpose.msra.mxu0 0
        %1554 = vmatprep.subr.bf16.mxu0 0
        %1555 = vmatpush1.bf16.xpose.msra.mxu0 0
        %1556 = vmatprep.subr.bf16.mxu0 0
        %1557 = vmatpush1.bf16.xpose.msra.mxu0 0
        %1558 = vmatprep.subr.bf16.mxu0 0
        %1559 = vmatpush1.bf16.xpose.msra.mxu0 0
        %1560 = vmatprep.mubr.bf16.mxu0 0
        %1561 = vmatmul.mubr.bf16.gmra.mrb[0].mxu0 %v1523
        %v1562 = vpop.f32.mrb[0].mxu0
        %v1563 = vadd.f32 0.0, %v1562
        %v1564 = vpop.f32.mrb[0].mxu0
        %v1565 = vpop.f32.mrb[0].mxu0
        %v1566 = vadd.f32 0.0, %v1565
        %v1567 = vpop.f32.mrb[0].mxu0
        %1568 = vdwg.mxu0
        %v1569 = vmul.f32 %v1413, 0.35355338
        %v1570 = vmul.f32 %v1416, 0.35355338
        %v1571 = vmul.f32 %v1463, 0.35355338
        %v1572 = vmul.f32 %v1466, 0.35355338
        %v1573 = vmul.f32 %v1513, 0.35355338
        %v1574 = vmul.f32 %v1516, 0.35355338
        %v1575 = vmul.f32 %v1563, 0.35355338
        %v1576 = vmul.f32 %v1566, 0.35355338
        %v1577 = vsel %vm601, %v1569, -inf
        %1578 = vmax.xlane.f32.xlu0 %v1577
        %v1579 = vpop.xlane.xlu0 %1578
        %v1580 = vsel %vm605, %v1570, -inf
        %1581 = vmax.xlane.f32.xlu0 %v1580
        %v1582 = vpop.xlane.xlu0 %1581
        %v1583 = vsel %vm601, %v1571, -inf
        %1584 = vmax.xlane.f32.xlu0 %v1583
        %v1585 = vpop.xlane.xlu0 %1584
        %v1586 = vsel %vm605, %v1572, -inf
        %1587 = vmax.xlane.f32.xlu0 %v1586
        %v1588 = vpop.xlane.xlu0 %1587
        %v1589 = vsel %vm601, %v1573, -inf
        %1590 = vmax.xlane.f32.xlu0 %v1589
        %v1591 = vpop.xlane.xlu0 %1590
        %v1592 = vsel %vm605, %v1574, -inf
        %1593 = vmax.xlane.f32.xlu0 %v1592
        %v1594 = vpop.xlane.xlu0 %1593
        %v1595 = vsel %vm601, %v1575, -inf
        %1596 = vmax.xlane.f32.xlu0 %v1595
        %v1597 = vpop.xlane.xlu0 %1596
        %v1598 = vsel %vm605, %v1576, -inf
        %1599 = vmax.xlane.f32.xlu0 %v1598
        %v1600 = vpop.xlane.xlu0 %1599
        %v1601 = vsub.f32 %v1569, %v1579
        %v1602 = vsub.f32 %v1570, %v1582
        %v1603 = vsub.f32 %v1571, %v1585
        %v1604 = vsub.f32 %v1572, %v1588
        %v1605 = vsub.f32 %v1573, %v1591
        %v1606 = vsub.f32 %v1574, %v1594
        %v1607 = vsub.f32 %v1575, %v1597
        %v1608 = vsub.f32 %v1576, %v1600
        %v1609 = vmul.f32 %v1601, 1.442695
        %v1610 = vpow.pop %v1609
        %v1611 = vmul.f32 %v1602, 1.442695
        %v1612 = vpow.pop %v1611
        %v1613 = vmul.f32 %v1603, 1.442695
        %v1614 = vpow.pop %v1613
        %v1615 = vmul.f32 %v1604, 1.442695
        %v1616 = vpow.pop %v1615
        %v1617 = vmul.f32 %v1605, 1.442695
        %v1618 = vpow.pop %v1617
        %v1619 = vmul.f32 %v1606, 1.442695
        %v1620 = vpow.pop %v1619
        %v1621 = vmul.f32 %v1607, 1.442695
        %v1622 = vpow.pop %v1621
        %v1623 = vmul.f32 %v1608, 1.442695
        %v1624 = vpow.pop %v1623
        %v1625 = vsel %vm601, %v1610, 0.0
        %1626 = vadd.xlane.f32.xlu0 %v1625
        %v1627 = vpop.xlane.xlu0 %1626
        %v1628 = vsel %vm605, %v1612, 0.0
        %1629 = vadd.xlane.f32.xlu0 %v1628
        %v1630 = vpop.xlane.xlu0 %1629
        %v1631 = vsel %vm601, %v1614, 0.0
        %1632 = vadd.xlane.f32.xlu0 %v1631
        %v1633 = vpop.xlane.xlu0 %1632
        %v1634 = vsel %vm605, %v1616, 0.0
        %1635 = vadd.xlane.f32.xlu0 %v1634
        %v1636 = vpop.xlane.xlu0 %1635
        %v1637 = vsel %vm601, %v1618, 0.0
        %1638 = vadd.xlane.f32.xlu0 %v1637
        %v1639 = vpop.xlane.xlu0 %1638
        %v1640 = vsel %vm605, %v1620, 0.0
        %1641 = vadd.xlane.f32.xlu0 %v1640
        %v1642 = vpop.xlane.xlu0 %1641
        %v1643 = vsel %vm601, %v1622, 0.0
        %1644 = vadd.xlane.f32.xlu0 %v1643
        %v1645 = vpop.xlane.xlu0 %1644
        %v1646 = vsel %vm605, %v1624, 0.0
        %1647 = vadd.xlane.f32.xlu0 %v1646
        %v1648 = vpop.xlane.xlu0 %1647
        %v1649 = vrcp.pop %v1627
        %v1650 = vrcp.pop %v1630
        %v1651 = vrcp.pop %v1633
        %v1652 = vrcp.pop %v1636
        %v1653 = vrcp.pop %v1639
        %v1654 = vrcp.pop %v1642
        %v1655 = vrcp.pop %v1645
        %v1656 = vrcp.pop %v1648
        %v1657 = vmul.f32 %v1610, %v1649
        %v1658 = vmul.f32 %v1612, %v1650
        %v1659 = vmul.f32 %v1614, %v1651
        %v1660 = vmul.f32 %v1616, %v1652
        %v1661 = vmul.f32 %v1618, %v1653
        %v1662 = vmul.f32 %v1620, %v1654
        %v1663 = vmul.f32 %v1622, %v1655
        %v1664 = vmul.f32 %v1624, %v1656
        %v1665 = vpack.c.bf16 %v1658, %v1657
        %v1666 = vpack.c.bf16 %v1660, %v1659
        %v1667 = vpack.c.bf16 %v1662, %v1661
        %v1668 = vpack.c.bf16 %v1664, %v1663
        %1669 = vrot.lane.b32.xlu0 %v1365, 64
        %v1670 = vpop.permute.xlu0 %1669
        %v1672 = vsel %vm601, %v1665, 0
        %v1675 = vand.u32 %v1670, %v703
        %1677 = vmatprep.subr.bf16.mxu0 0
        %1678 = vmatpush1.bf16.msra.mxu0 %v1675
        %1679 = vmatprep.subr.bf16.mxu0 0
        %1680 = vmatpush1.bf16.msra.mxu0 0
        %1681 = vmatprep.subr.bf16.mxu0 0
        %1682 = vmatpush1.bf16.msra.mxu0 0
        %1683 = vmatprep.subr.bf16.mxu0 0
        %1684 = vmatpush1.bf16.msra.mxu0 0
        %1685 = vmatprep.subr.bf16.mxu0 0
        %1686 = vmatpush1.bf16.msra.mxu0 0
        %1687 = vmatprep.subr.bf16.mxu0 0
        %1688 = vmatpush1.bf16.msra.mxu0 0
        %1689 = vmatprep.subr.bf16.mxu0 0
        %1690 = vmatpush1.bf16.msra.mxu0 0
        %1691 = vmatprep.subr.bf16.mxu0 0
        %1692 = vmatpush1.bf16.msra.mxu0 0
        %1693 = vmatprep.subr.bf16.mxu0 0
        %1694 = vmatpush1.bf16.msra.mxu0 0
        %1695 = vmatprep.subr.bf16.mxu0 0
        %1696 = vmatpush1.bf16.msra.mxu0 0
        %1697 = vmatprep.subr.bf16.mxu0 0
        %1698 = vmatpush1.bf16.msra.mxu0 0
        %1699 = vmatprep.subr.bf16.mxu0 0
        %1700 = vmatpush1.bf16.msra.mxu0 0
        %1701 = vmatprep.subr.bf16.mxu0 0
        %1702 = vmatpush1.bf16.msra.mxu0 0
        %1703 = vmatprep.subr.bf16.mxu0 0
        %1704 = vmatpush1.bf16.msra.mxu0 0
        %1705 = vmatprep.subr.bf16.mxu0 0
        %1706 = vmatpush1.bf16.msra.mxu0 0
        %1707 = vmatprep.subr.bf16.mxu0 0
        %1708 = vmatpush1.bf16.msra.mxu0 0
        %1709 = vmatprep.mubr.bf16.mxu0 0
        %1710 = vmatmul.mubr.bf16.gmra.mrb[0].mxu0 %v1672
        %v1711 = vpop.f32.mrb[0].mxu0
        %v1712 = vadd.f32 0.0, %v1711
        %v1713 = vpop.f32.mrb[0].mxu0
        %v1714 = vpop.f32.mrb[0].mxu0
        %v1715 = vadd.f32 0.0, %v1714
        %v1716 = vpop.f32.mrb[0].mxu0
        %1717 = vdwg.mxu0
        %1718 = vrot.lane.b32.xlu0 %v1366, 64
        %v1719 = vpop.permute.xlu0 %1718
        %v1721 = vsel %vm601, %v1666, 0
        %v1724 = vand.u32 %v1719, %v703
        %1726 = vmatprep.subr.bf16.mxu0 0
        %1727 = vmatpush1.bf16.msra.mxu0 %v1724
        %1728 = vmatprep.subr.bf16.mxu0 0
        %1729 = vmatpush1.bf16.msra.mxu0 0
        %1730 = vmatprep.subr.bf16.mxu0 0
        %1731 = vmatpush1.bf16.msra.mxu0 0
        %1732 = vmatprep.subr.bf16.mxu0 0
        %1733 = vmatpush1.bf16.msra.mxu0 0
        %1734 = vmatprep.subr.bf16.mxu0 0
        %1735 = vmatpush1.bf16.msra.mxu0 0
        %1736 = vmatprep.subr.bf16.mxu0 0
        %1737 = vmatpush1.bf16.msra.mxu0 0
        %1738 = vmatprep.subr.bf16.mxu0 0
        %1739 = vmatpush1.bf16.msra.mxu0 0
        %1740 = vmatprep.subr.bf16.mxu0 0
        %1741 = vmatpush1.bf16.msra.mxu0 0
        %1742 = vmatprep.subr.bf16.mxu0 0
        %1743 = vmatpush1.bf16.msra.mxu0 0
        %1744 = vmatprep.subr.bf16.mxu0 0
        %1745 = vmatpush1.bf16.msra.mxu0 0
        %1746 = vmatprep.subr.bf16.mxu0 0
        %1747 = vmatpush1.bf16.msra.mxu0 0
        %1748 = vmatprep.subr.bf16.mxu0 0
        %1749 = vmatpush1.bf16.msra.mxu0 0
        %1750 = vmatprep.subr.bf16.mxu0 0
        %1751 = vmatpush1.bf16.msra.mxu0 0
        %1752 = vmatprep.subr.bf16.mxu0 0
        %1753 = vmatpush1.bf16.msra.mxu0 0
        %1754 = vmatprep.subr.bf16.mxu0 0
        %1755 = vmatpush1.bf16.msra.mxu0 0
        %1756 = vmatprep.subr.bf16.mxu0 0
        %1757 = vmatpush1.bf16.msra.mxu0 0
        %1758 = vmatprep.mubr.bf16.mxu0 0
        %1759 = vmatmul.mubr.bf16.gmra.mrb[0].mxu0 %v1721
        %v1760 = vpop.f32.mrb[0].mxu0
        %v1761 = vadd.f32 0.0, %v1760
        %v1762 = vpop.f32.mrb[0].mxu0
        %v1763 = vpop.f32.mrb[0].mxu0
        %v1764 = vadd.f32 0.0, %v1763
        %v1765 = vpop.f32.mrb[0].mxu0
        %1766 = vdwg.mxu0
        %1767 = vrot.lane.b32.xlu0 %v1367, 64
        %v1768 = vpop.permute.xlu0 %1767
        %v1770 = vsel %vm601, %v1667, 0
        %v1773 = vand.u32 %v1768, %v703
        %1775 = vmatprep.subr.bf16.mxu0 0
        %1776 = vmatpush1.bf16.msra.mxu0 %v1773
        %1777 = vmatprep.subr.bf16.mxu0 0
        %1778 = vmatpush1.bf16.msra.mxu0 0
        %1779 = vmatprep.subr.bf16.mxu0 0
        %1780 = vmatpush1.bf16.msra.mxu0 0
        %1781 = vmatprep.subr.bf16.mxu0 0
        %1782 = vmatpush1.bf16.msra.mxu0 0
        %1783 = vmatprep.subr.bf16.mxu0 0
        %1784 = vmatpush1.bf16.msra.mxu0 0
        %1785 = vmatprep.subr.bf16.mxu0 0
        %1786 = vmatpush1.bf16.msra.mxu0 0
        %1787 = vmatprep.subr.bf16.mxu0 0
        %1788 = vmatpush1.bf16.msra.mxu0 0
        %1789 = vmatprep.subr.bf16.mxu0 0
        %1790 = vmatpush1.bf16.msra.mxu0 0
        %1791 = vmatprep.subr.bf16.mxu0 0
        %1792 = vmatpush1.bf16.msra.mxu0 0
        %1793 = vmatprep.subr.bf16.mxu0 0
        %1794 = vmatpush1.bf16.msra.mxu0 0
        %1795 = vmatprep.subr.bf16.mxu0 0
        %1796 = vmatpush1.bf16.msra.mxu0 0
        %1797 = vmatprep.subr.bf16.mxu0 0
        %1798 = vmatpush1.bf16.msra.mxu0 0
        %1799 = vmatprep.subr.bf16.mxu0 0
        %1800 = vmatpush1.bf16.msra.mxu0 0
        %1801 = vmatprep.subr.bf16.mxu0 0
        %1802 = vmatpush1.bf16.msra.mxu0 0
        %1803 = vmatprep.subr.bf16.mxu0 0
        %1804 = vmatpush1.bf16.msra.mxu0 0
        %1805 = vmatprep.subr.bf16.mxu0 0
        %1806 = vmatpush1.bf16.msra.mxu0 0
        %1807 = vmatprep.mubr.bf16.mxu0 0
        %1808 = vmatmul.mubr.bf16.gmra.mrb[0].mxu0 %v1770
        %v1809 = vpop.f32.mrb[0].mxu0
        %v1810 = vadd.f32 0.0, %v1809
        %v1811 = vpop.f32.mrb[0].mxu0
        %v1812 = vpop.f32.mrb[0].mxu0
        %v1813 = vadd.f32 0.0, %v1812
        %v1814 = vpop.f32.mrb[0].mxu0
        %1815 = vdwg.mxu0
        %1816 = vrot.lane.b32.xlu0 %v1368, 64
        %v1817 = vpop.permute.xlu0 %1816
        %v1819 = vsel %vm601, %v1668, 0
        %v1822 = vand.u32 %v1817, %v703
        %1824 = vmatprep.subr.bf16.mxu0 0
        %1825 = vmatpush1.bf16.msra.mxu0 %v1822
        %1826 = vmatprep.subr.bf16.mxu0 0
        %1827 = vmatpush1.bf16.msra.mxu0 0
        %1828 = vmatprep.subr.bf16.mxu0 0
        %1829 = vmatpush1.bf16.msra.mxu0 0
        %1830 = vmatprep.subr.bf16.mxu0 0
        %1831 = vmatpush1.bf16.msra.mxu0 0
        %1832 = vmatprep.subr.bf16.mxu0 0
        %1833 = vmatpush1.bf16.msra.mxu0 0
        %1834 = vmatprep.subr.bf16.mxu0 0
        %1835 = vmatpush1.bf16.msra.mxu0 0
        %1836 = vmatprep.subr.bf16.mxu0 0
        %1837 = vmatpush1.bf16.msra.mxu0 0
        %1838 = vmatprep.subr.bf16.mxu0 0
        %1839 = vmatpush1.bf16.msra.mxu0 0
        %1840 = vmatprep.subr.bf16.mxu0 0
        %1841 = vmatpush1.bf16.msra.mxu0 0
        %1842 = vmatprep.subr.bf16.mxu0 0
        %1843 = vmatpush1.bf16.msra.mxu0 0
        %1844 = vmatprep.subr.bf16.mxu0 0
        %1845 = vmatpush1.bf16.msra.mxu0 0
        %1846 = vmatprep.subr.bf16.mxu0 0
        %1847 = vmatpush1.bf16.msra.mxu0 0
        %1848 = vmatprep.subr.bf16.mxu0 0
        %1849 = vmatpush1.bf16.msra.mxu0 0
        %1850 = vmatprep.subr.bf16.mxu0 0
        %1851 = vmatpush1.bf16.msra.mxu0 0
        %1852 = vmatprep.subr.bf16.mxu0 0
        %1853 = vmatpush1.bf16.msra.mxu0 0
        %1854 = vmatprep.subr.bf16.mxu0 0
        %1855 = vmatpush1.bf16.msra.mxu0 0
        %1856 = vmatprep.mubr.bf16.mxu0 0
        %1857 = vmatmul.mubr.bf16.gmra.mrb[0].mxu0 %v1819
        %v1858 = vpop.f32.mrb[0].mxu0
        %v1859 = vadd.f32 0.0, %v1858
        %v1860 = vpop.f32.mrb[0].mxu0
        %v1861 = vpop.f32.mrb[0].mxu0
        %v1862 = vadd.f32 0.0, %v1861
        %v1863 = vpop.f32.mrb[0].mxu0
        %1864 = vdwg.mxu0
        %1867 = vrot.lane.b32.xlu0 %v1761, 8
        %v1868 = vpop.permute.xlu0 %1867
        %1869 = vrot.lane.b32.xlu0 %v1764, 8
        %v1870 = vpop.permute.xlu0 %1869
        %1875 = vrot.lane.b32.xlu0 %v1810, 16
        %v1876 = vpop.permute.xlu0 %1875
        %1877 = vrot.lane.b32.xlu0 %v1813, 16
        %v1878 = vpop.permute.xlu0 %1877
        %1883 = vrot.lane.b32.xlu0 %v1859, 24
        %v1884 = vpop.permute.xlu0 %1883
        %1885 = vrot.lane.b32.xlu0 %v1862, 24
        %v1886 = vpop.permute.xlu0 %1885
        %v1889 = vsel %vm395, %v1712, %v1868
        %v1890 = vsel %vm395, %v1715, %v1870
        %v1891 = vsel %vm921, %v1889, %v1876
        %v1892 = vsel %vm921, %v1890, %v1878
        %v1893 = vsel %vm924, %v1891, %v1884
        %v1894 = vsel %vm924, %v1892, %v1886
        %v1895 = vpack.c.bf16 %v1894, %v1893
        %v1896 = vlaneseq
        %v1897 = vshrl.u32 %v1896, 7
        %v1898 = vsub.s32 1, %v1897
        %v1899 = vrot.slane %v1283, %v1898
        %v1904 = vunpack.c.l.b16 %v1264
        %v1905 = vunpack.c.l.b16 %v1265
        %v1906 = vunpack.c.l.b16 %v1266
        %v1907 = vunpack.c.l.b16 %v1267
        %v1908 = vpack.c.b16 %v1905, %v1904
        %v1909 = vpack.c.b16 %v1907, %v1906
        %v1913 = vsel %vm271, %v1895, 0
        %1915 = vmatprep.subr.bf16.mxu0 0
        %1916 = vmatpush1.bf16.msra.mxu0 %v1908
        %1917 = vmatprep.subr.bf16.mxu0 0
        %1918 = vmatpush1.bf16.msra.mxu0 %v1909
        %1919 = vmatprep.subr.bf16.mxu0 0
        %1920 = vmatpush1.bf16.msra.mxu0 0
        %1921 = vmatprep.subr.bf16.mxu0 0
        %1922 = vmatpush1.bf16.msra.mxu0 0
        %1923 = vmatprep.subr.bf16.mxu0 0
        %1924 = vmatpush1.bf16.msra.mxu0 0
        %1925 = vmatprep.subr.bf16.mxu0 0
        %1926 = vmatpush1.bf16.msra.mxu0 0
        %1927 = vmatprep.subr.bf16.mxu0 0
        %1928 = vmatpush1.bf16.msra.mxu0 0
        %1929 = vmatprep.subr.bf16.mxu0 0
        %1930 = vmatpush1.bf16.msra.mxu0 0
        %1931 = vmatprep.subr.bf16.mxu0 0
        %1932 = vmatpush1.bf16.msra.mxu0 0
        %1933 = vmatprep.subr.bf16.mxu0 0
        %1934 = vmatpush1.bf16.msra.mxu0 0
        %1935 = vmatprep.subr.bf16.mxu0 0
        %1936 = vmatpush1.bf16.msra.mxu0 0
        %1937 = vmatprep.subr.bf16.mxu0 0
        %1938 = vmatpush1.bf16.msra.mxu0 0
        %1939 = vmatprep.subr.bf16.mxu0 0
        %1940 = vmatpush1.bf16.msra.mxu0 0
        %1941 = vmatprep.subr.bf16.mxu0 0
        %1942 = vmatpush1.bf16.msra.mxu0 0
        %1943 = vmatprep.subr.bf16.mxu0 0
        %1944 = vmatpush1.bf16.msra.mxu0 0
        %1945 = vmatprep.subr.bf16.mxu0 0
        %1946 = vmatpush1.bf16.msra.mxu0 0
        %1947 = vmatprep.mubr.bf16.mxu0 0
        %1948 = vmatmul.mubr.bf16.gmra.mrb[0].mxu0 %v1913
        %v1949 = vpop.f32.mrb[0].mxu0
        %v1950 = vadd.f32 %v1899, %v1949
        %v1951 = vpop.f32.mrb[0].mxu0
        %v1952 = vpop.f32.mrb[0].mxu0
        %v1953 = vadd.f32 %v1899, %v1952
        %v1954 = vpop.f32.mrb[0].mxu0
        %1955 = vdwg.mxu0
        %v1956 = vadd.f32 %v1256, %v1950
        %v1957 = vadd.f32 %v1257, %v1953
        %v1958 = vsel %vm271, %v1956, 0.0
        %1959 = vadd.xlane.f32.xlu0 %v1958
        %v1960 = vpop.xlane.xlu0 %1959
        %v1961 = vsel %vm281, %v1957, 0.0
        %1962 = vadd.xlane.f32.xlu0 %v1961
        %v1963 = vpop.xlane.xlu0 %1962
        %v1964 = vmul.f32 %v1960, %v996
        %v1965 = vmul.f32 %v1963, %v996
        %v1966 = vsub.f32 %v1956, %v1964
        %v1967 = vsub.f32 %v1957, %v1965
        %v1968 = vmul.f32 %v1966, %v1966
        %v1969 = vmul.f32 %v1967, %v1967
        %v1970 = vsel %vm271, %v1968, 0.0
        %1971 = vadd.xlane.f32.xlu0 %v1970
        %v1972 = vpop.xlane.xlu0 %1971
        %v1973 = vsel %vm281, %v1969, 0.0
        %1974 = vadd.xlane.f32.xlu0 %v1973
        %v1975 = vpop.xlane.xlu0 %1974
        %v1976 = vmul.f32 %v1972, %v996
        %v1977 = vmul.f32 %v1975, %v996
        %v1978 = vadd.f32 %v1976, 1e-05
        %v1979 = vadd.f32 %v1977, 1e-05
        %v1980 = vrsqrt.pop %v1978
        %v1981 = vrsqrt.pop %v1979
        %v1982 = vmul.f32 %v1966, %v1980
        %v1983 = vmul.f32 %v1967, %v1981
        %v1984 = vlaneseq
        %v1985 = vshrl.u32 %v1984, 7
        %v1986 = vsub.s32 2, %v1985
        %v1987 = vrot.slane %v1283, %v1986
        %v1988 = vmul.f32 %v1982, %v1987
        %v1989 = vmul.f32 %v1983, %v1987
        %v1990 = vlaneseq
        %v1991 = vshrl.u32 %v1990, 7
        %v1992 = vsub.s32 3, %v1991
        %v1993 = vrot.slane %v1283, %v1992
        %v1994 = vadd.f32 %v1988, %v1993
        %v1995 = vadd.f32 %v1989, %v1993
        %v1996 = vpack.c.bf16 %v1995, %v1994
        %v1997 = vlaneseq
        %v1998 = vshrl.u32 %v1997, 7
        %v1999 = vsub.s32 6, %v1998
        %v2000 = vrot.slane %v1283, %v1999
        %v2005 = vunpack.c.l.b16 %v1269
        %v2006 = vunpack.c.l.b16 %v1270
        %v2007 = vunpack.c.l.b16 %v1271
        %v2008 = vunpack.c.l.b16 %v1272
        %v2009 = vpack.c.b16 %v2006, %v2005
        %v2010 = vpack.c.b16 %v2008, %v2007
        %v2014 = vsel %vm271, %v1996, 0
        %2016 = vmatprep.subr.bf16.mxu0 0
        %2017 = vmatpush1.bf16.msra.mxu0 %v2009
        %2018 = vmatprep.subr.bf16.mxu0 0
        %2019 = vmatpush1.bf16.msra.mxu0 %v2010
        %2020 = vmatprep.subr.bf16.mxu0 0
        %2021 = vmatpush1.bf16.msra.mxu0 0
        %2022 = vmatprep.subr.bf16.mxu0 0
        %2023 = vmatpush1.bf16.msra.mxu0 0
        %2024 = vmatprep.subr.bf16.mxu0 0
        %2025 = vmatpush1.bf16.msra.mxu0 0
        %2026 = vmatprep.subr.bf16.mxu0 0
        %2027 = vmatpush1.bf16.msra.mxu0 0
        %2028 = vmatprep.subr.bf16.mxu0 0
        %2029 = vmatpush1.bf16.msra.mxu0 0
        %2030 = vmatprep.subr.bf16.mxu0 0
        %2031 = vmatpush1.bf16.msra.mxu0 0
        %2032 = vmatprep.subr.bf16.mxu0 0
        %2033 = vmatpush1.bf16.msra.mxu0 0
        %2034 = vmatprep.subr.bf16.mxu0 0
        %2035 = vmatpush1.bf16.msra.mxu0 0
        %2036 = vmatprep.subr.bf16.mxu0 0
        %2037 = vmatpush1.bf16.msra.mxu0 0
        %2038 = vmatprep.subr.bf16.mxu0 0
        %2039 = vmatpush1.bf16.msra.mxu0 0
        %2040 = vmatprep.subr.bf16.mxu0 0
        %2041 = vmatpush1.bf16.msra.mxu0 0
        %2042 = vmatprep.subr.bf16.mxu0 0
        %2043 = vmatpush1.bf16.msra.mxu0 0
        %2044 = vmatprep.subr.bf16.mxu0 0
        %2045 = vmatpush1.bf16.msra.mxu0 0
        %2046 = vmatprep.subr.bf16.mxu0 0
        %2047 = vmatpush1.bf16.msra.mxu0 0
        %2048 = vmatprep.mubr.bf16.mxu0 0
        %2049 = vmatmul.mubr.bf16.gmra.mrb[0].mxu0 %v2014
        %v2050 = vpop.f32.mrb[0].mxu0
        %v2051 = vadd.f32 %v2000, %v2050
        %v2052 = vpop.f32.mrb[0].mxu0
        %v2053 = vpop.f32.mrb[0].mxu0
        %v2054 = vadd.f32 %v2000, %v2053
        %v2055 = vpop.f32.mrb[0].mxu0
        %2056 = vdwg.mxu0
        %v2057 = vmul.f32 %v2051, 0.5
        %v2058 = vmul.f32 %v2054, 0.5
        %v2059 = vmul.f32 %v2051, 0.70710677
        %v2060 = vmul.f32 %v2054, 0.70710677
        %vm2061 = vcmp.ge.f32.partialorder %v2059, 0.0
        %vm2062 = vcmp.ge.f32.partialorder %v2060, 0.0
        %v2063 = vsel %vm2061, 1.0, -1.0
        %v2064 = vsel %vm2062, 1.0, -1.0
        %v2065 = vand.u32 2147483647, %v2059
        %v2066 = vand.u32 2147483647, %v2060
        %v2067 = vmul.f32 %v2065, 0.3275911
        %v2068 = vmul.f32 %v2066, 0.3275911
        %v2069 = vadd.f32 %v2067, 1.0
        %v2070 = vadd.f32 %v2068, 1.0
        %v2071 = vrcp.pop %v2069
        %v2072 = vmul.f32 1.0, %v2071
        %v2073 = vrcp.pop %v2070
        %v2074 = vmul.f32 1.0, %v2073
        %v2075 = vmul.f32 %v2072, 1.0614054
        %v2076 = vmul.f32 %v2074, 1.0614054
        %v2077 = vadd.f32 %v2075, -1.4531521
        %v2078 = vadd.f32 %v2076, -1.4531521
        %v2079 = vmul.f32 %v2077, %v2072
        %v2080 = vmul.f32 %v2078, %v2074
        %v2081 = vadd.f32 %v2079, 1.4214138
        %v2082 = vadd.f32 %v2080, 1.4214138
        %v2083 = vmul.f32 %v2081, %v2072
        %v2084 = vmul.f32 %v2082, %v2074
        %v2085 = vadd.f32 %v2083, -0.28449672
        %v2086 = vadd.f32 %v2084, -0.28449672
        %v2087 = vmul.f32 %v2085, %v2072
        %v2088 = vmul.f32 %v2086, %v2074
        %v2089 = vadd.f32 %v2087, 0.2548296
        %v2090 = vadd.f32 %v2088, 0.2548296
        %v2091 = vmul.f32 %v2089, %v2072
        %v2092 = vmul.f32 %v2090, %v2074
        %v2093 = vsub.f32 0.0, %v2065
        %v2094 = vsub.f32 0.0, %v2066
        %v2095 = vmul.f32 %v2093, %v2065
        %v2096 = vmul.f32 %v2094, %v2066
        %v2097 = vmul.f32 %v2095, 1.442695
        %v2098 = vpow.pop %v2097
        %v2099 = vmul.f32 %v2096, 1.442695
        %v2100 = vpow.pop %v2099
        %v2101 = vmul.f32 %v2091, %v2098
        %v2102 = vmul.f32 %v2092, %v2100
        %v2103 = vsub.f32 1.0, %v2101
        %v2104 = vsub.f32 1.0, %v2102
        %v2105 = vmul.f32 %v2063, %v2103
        %v2106 = vmul.f32 %v2064, %v2104
        %v2107 = vadd.f32 %v2105, 1.0
        %v2108 = vadd.f32 %v2106, 1.0
        %v2109 = vmul.f32 %v2057, %v2107
        %v2110 = vmul.f32 %v2058, %v2108
        %v2111 = vpack.c.bf16 %v2110, %v2109
        %v2112 = vlaneseq
        %v2113 = vshrl.u32 %v2112, 7
        %v2114 = vsub.s32 7, %v2113
        %v2115 = vrot.slane %v1283, %v2114
        %v2124 = vunpack.c.l.b16 %v1274
        %v2125 = vunpack.c.l.b16 %v1275
        %v2126 = vunpack.c.l.b16 %v1276
        %v2127 = vunpack.c.l.b16 %v1277
        %v2128 = vunpack.c.l.b16 %v1278
        %v2129 = vunpack.c.l.b16 %v1279
        %v2130 = vunpack.c.l.b16 %v1280
        %v2131 = vunpack.c.l.b16 %v1281
        %v2132 = vpack.c.b16 %v2125, %v2124
        %v2133 = vpack.c.b16 %v2127, %v2126
        %v2134 = vpack.c.b16 %v2129, %v2128
        %v2135 = vpack.c.b16 %v2131, %v2130
        %v2141 = vsel %vm1173, %v2111, 0
        %2143 = vmatprep.subr.bf16.mxu0 0
        %2144 = vmatpush1.bf16.msra.mxu0 %v2132
        %2145 = vmatprep.subr.bf16.mxu0 0
        %2146 = vmatpush1.bf16.msra.mxu0 %v2133
        %2147 = vmatprep.subr.bf16.mxu0 0
        %2148 = vmatpush1.bf16.msra.mxu0 %v2134
        %2149 = vmatprep.subr.bf16.mxu0 0
        %2150 = vmatpush1.bf16.msra.mxu0 %v2135
        %2151 = vmatprep.subr.bf16.mxu0 0
        %2152 = vmatpush1.bf16.msra.mxu0 0
        %2153 = vmatprep.subr.bf16.mxu0 0
        %2154 = vmatpush1.bf16.msra.mxu0 0
        %2155 = vmatprep.subr.bf16.mxu0 0
        %2156 = vmatpush1.bf16.msra.mxu0 0
        %2157 = vmatprep.subr.bf16.mxu0 0
        %2158 = vmatpush1.bf16.msra.mxu0 0
        %2159 = vmatprep.subr.bf16.mxu0 0
        %2160 = vmatpush1.bf16.msra.mxu0 0
        %2161 = vmatprep.subr.bf16.mxu0 0
        %2162 = vmatpush1.bf16.msra.mxu0 0
        %2163 = vmatprep.subr.bf16.mxu0 0
        %2164 = vmatpush1.bf16.msra.mxu0 0
        %2165 = vmatprep.subr.bf16.mxu0 0
        %2166 = vmatpush1.bf16.msra.mxu0 0
        %2167 = vmatprep.subr.bf16.mxu0 0
        %2168 = vmatpush1.bf16.msra.mxu0 0
        %2169 = vmatprep.subr.bf16.mxu0 0
        %2170 = vmatpush1.bf16.msra.mxu0 0
        %2171 = vmatprep.subr.bf16.mxu0 0
        %2172 = vmatpush1.bf16.msra.mxu0 0
        %2173 = vmatprep.subr.bf16.mxu0 0
        %2174 = vmatpush1.bf16.msra.mxu0 0
        %2175 = vmatprep.mubr.bf16.mxu0 0
        %2176 = vmatmul.mubr.bf16.gmra.mrb[0].mxu0 %v2141
        %v2177 = vpop.f32.mrb[0].mxu0
        %v2178 = vadd.f32 %v2115, %v2177
        %v2179 = vpop.f32.mrb[0].mxu0
        %v2180 = vpop.f32.mrb[0].mxu0
        %v2181 = vadd.f32 %v2115, %v2180
        %v2182 = vpop.f32.mrb[0].mxu0
        %2183 = vdwg.mxu0
        %v2184 = vadd.f32 %v1994, %v2178
        %v2185 = vadd.f32 %v1995, %v2181
        %v2186 = vsel %vm271, %v2184, 0.0
        %2187 = vadd.xlane.f32.xlu0 %v2186
        %v2188 = vpop.xlane.xlu0 %2187
        %v2189 = vsel %vm281, %v2185, 0.0
        %2190 = vadd.xlane.f32.xlu0 %v2189
        %v2191 = vpop.xlane.xlu0 %2190
        %v2192 = vmul.f32 %v2188, %v996
        %v2193 = vmul.f32 %v2191, %v996
        %v2194 = vsub.f32 %v2184, %v2192
        %v2195 = vsub.f32 %v2185, %v2193
        %v2196 = vmul.f32 %v2194, %v2194
        %v2197 = vmul.f32 %v2195, %v2195
        %v2198 = vsel %vm271, %v2196, 0.0
        %2199 = vadd.xlane.f32.xlu0 %v2198
        %v2200 = vpop.xlane.xlu0 %2199
        %v2201 = vsel %vm281, %v2197, 0.0
        %2202 = vadd.xlane.f32.xlu0 %v2201
        %v2203 = vpop.xlane.xlu0 %2202
        %v2204 = vmul.f32 %v2200, %v996
        %v2205 = vmul.f32 %v2203, %v996
        %v2206 = vadd.f32 %v2204, 1e-05
        %v2207 = vadd.f32 %v2205, 1e-05
        %v2208 = vrsqrt.pop %v2206
        %v2209 = vrsqrt.pop %v2207
        %v2210 = vmul.f32 %v2194, %v2208
        %v2211 = vmul.f32 %v2195, %v2209
        %v2212 = vlaneseq
        %v2213 = vshrl.u32 %v2212, 7
        %v2214 = vsub.s32 4, %v2213
        %v2215 = vrot.slane %v1283, %v2214
        %v2216 = vmul.f32 %v2210, %v2215
        %v2217 = vmul.f32 %v2211, %v2215
        %v2218 = vlaneseq
        %v2219 = vshrl.u32 %v2218, 7
        %v2220 = vsub.s32 5, %v2219
        %v2221 = vrot.slane %v1283, %v2220
        %v2222 = vadd.f32 %v2216, %v2221
        %v2223 = vadd.f32 %v2217, %v2221
        %2224 = vst.msk [vmem:[%s268] sm:$0xff] %vm271, %v2222
        %2225 = vst.msk [vmem:[%s268 + $0x8] sm:$0x1] %vm281, %v2223
        %p2226 = scmp.lt.s32.totalorder %s20, 1
        %s2227 = scalar_select %p2226, %s20, 1
        %s2228 = smul.addr %s2227, 2
        %s2229 = smul.addr %s2228, 8
        %s2230 = scalar_lea.vmem %s6, %s2229
        // Predicated region
        $region49: #{tpu_custom_call.1} parent=43 // pred_check
          %p2231 = pneg %p169
        $region50: #{tpu_custom_call.1} parent=43 // pred_check_branch
          %2233 = sbr.rel (%p2231) target = $region52
        $region51: #{tpu_custom_call.1} parent=43 // pred_region
          _
        $region52: #{tpu_custom_call.1} parent=43 // pred_fallthru
          _
      $region44: #{tpu_custom_call.1} parent=5 // pred_fallthru
        _
      %p2234 = scmp.le.s32.totalorder 2, %s15
      // Predicated region
      $region53: #{tpu_custom_call.1} parent=5 // pred_check
        %p2235 = pneg %p2234
      $region54: #{tpu_custom_call.1} parent=5 // pred_check_branch
        %2237 = sbr.rel (%p2235) target = $region56
      $region55: #{tpu_custom_call.1} parent=5 // pred_region
        %s2238 = ssub.s32 %s15, 2
        // Predicated region
        $region57: #{tpu_custom_call.1} parent=55 // pred_check
          %p2239 = pneg %p175
        $region58: #{tpu_custom_call.1} parent=55 // pred_check_branch
          %2241 = sbr.rel (%p2239) target = $region60
        $region59: #{tpu_custom_call.1} parent=55 // pred_region
          %p2242 = scmp.lt.s32.totalorder %s21, 1
          %s2243 = scalar_select %p2242, %s21, 1
          %s2244 = smul.addr %s2243, 2
          %s2245 = smul.addr %s2244, 8
          %s2246 = scalar_lea.vmem %s6, %s2245
        $region60: #{tpu_custom_call.1} parent=55 // pred_fallthru
          _
      $region56: #{tpu_custom_call.1} parent=5 // pred_fallthru
        _
    $region6: #{tpu_custom_call.1} parent=1 // loop_footer
      %s19 = sadd.s32 1, %s15
    $region7: #{tpu_custom_call.1} parent=1 // loop_footer_branch
      %14 = sbr.rel target = $region3
    $region8: #{tpu_custom_call.1} parent=1 // loop_exit
      _
    %2247 = vsyncpa [#allocation4], 1
    %s2248 = scalar_lea.sflag [#allocation4], 1
    %2249 = vsyncpa %s2248, 1

</llo_original>
